<compile_context>
chip_gen: v5e
topology: v5e:2x2
jax: 0.10.0
libtpu: 0.0.40
codegen_flags: <defaults>
</compile_context>

<pallas_src>
import math
import functools

import jax
import jax.numpy as jnp
from jax import lax
from jax.experimental import pallas as pl
from jax.experimental.pallas import tpu as pltpu


# ----------------------------------------------------------------------------
# util.* replacements (plain JAX glue)
# ----------------------------------------------------------------------------
def meshgrid(res):
    r = jnp.arange(res, dtype=jnp.float32)
    gx, gy, gz = jnp.meshgrid(r, r, r, indexing="ij")
    return jnp.stack([gx, gy, gz], axis=0)  # (3, res, res, res)


def dens_sample(dens, n_points):
    """Deterministic proportional allocation of n_points over grid cells.

    dens: (b, 1, g, g, g) non-negative densities.
    Returns integer counts (b, g*g*g) summing exactly to n_points per batch.
    # TODO(synk): util.densSample in the reference is a stochastic sampler;
    # this is a deterministic proportional-allocation stand-in.
    """
    b = dens.shape[0]
    d = dens.reshape(b, -1).astype(jnp.float32)
    d = jnp.maximum(d, 0.0) + 1e-8
    d = d / jnp.sum(d, axis=1, keepdims=True)
    cum = jnp.cumsum(d, axis=1)
    q = jnp.round(cum * n_points).astype(jnp.int32)
    q = q.at[:, -1].set(n_points)
    n = jnp.concatenate([q[:, :1], q[:, 1:] - q[:, :-1]], axis=1)
    return jnp.maximum(n, 0)  # (b, cells)


def expand_indices(n_counts, n_points):
    """Replicates the PyTorch loop:
        for j in 1..max: indices += nonzero(n >= j)
    i.e. ordering is (round j, cell) lexicographic.  Returns (b, n_points)."""
    b, cells = n_counts.shape
    rounds = jnp.arange(1, n_points + 1, dtype=jnp.int32)[:, None]  # (n_points, 1)

    def per_batch(ni):
        valid = ni[None, :] >= rounds                     # (n_points, cells)
        flat = valid.reshape(-1)
        m = flat.shape[0]
        key = jnp.where(flat, jnp.arange(m, dtype=jnp.int32), m)
        pos = jnp.sort(key)[:n_points]                    # first n_points valid slots
        return pos % cells                                # cell index of each point

    return jax.vmap(per_batch)(n_counts)


# ----------------------------------------------------------------------------
# Pallas kernel: fused gather(+layer1) + noise FMAs + layer2 + norm/reg + offset
# Layout is channels-first: channels on sublanes, points on lanes.
# ----------------------------------------------------------------------------
def _generator_kernel(idx_ref, rnd_ref, table_ref, w1r_ref, w2_ref, b2_ref,
                      out_ref, reg_ref, *, rnd_dim, res, sqrt3_over_s):
    cells = table_ref.shape[2]
    tile_n = idx_ref.shape[2]

    idx = idx_ref[0]                                           # (1, tile_n) int32

    # ---- fused cell gather + first MLP layer (bf16 MXU, f32 accumulate) ----
    # table already holds W1x @ x + b1 per cell, so the one-hot matmul yields
    # the pre-activation hidden features for each point directly.
    cell_ids = lax.broadcasted_iota(jnp.int32, (cells, tile_n), 0)
    onehot = jnp.where(cell_ids == idx, 1.0, 0.0).astype(jnp.bfloat16)
    h = jnp.dot(table_ref[0], onehot,
                preferred_element_type=jnp.float32)            # (hidden, tile_n)

    # ---- noise contribution: rnd_dim broadcast-FMAs on the VPU -------------
    rnd = rnd_ref[0]                                           # (rnd_dim, tile_n)
    for r in range(rnd_dim):
        h = h + w1r_ref[r] * rnd[r:r + 1, :]                   # (hidden,1)*(1,N)

    h = jnp.maximum(h, 0.0).astype(jnp.bfloat16)               # ReLU, bf16 operand

    # ---- second MLP layer ---------------------------------------------------
    o = jnp.dot(w2_ref[...], h,
                preferred_element_type=jnp.float32) + b2_ref[...]   # (3, tile_n)

    # reg on the raw generator output (norm BEFORE the grid offset is added)
    o0, o1, o2 = o[0:1, :], o[1:2, :], o[2:3, :]
    norm = jnp.sqrt(o0 * o0 + o1 * o1 + o2 * o2)               # (1, tile_n)
    reg_ref[0] = jnp.maximum(norm - sqrt3_over_s, 0.0)

    # ---- exact grid offset reconstructed from the int32 cell index ---------
    # flattened index = i*res^2 + j*res + k ; all values < 2^24 so f32 math is
    # exact (float division by small integers, then floor).
    idx_f = idx.astype(jnp.float32)
    i0 = jnp.floor(idx_f / float(res * res))
    rem = idx_f - i0 * float(res * res)
    i1 = jnp.floor(rem / float(res))
    i2 = rem - i1 * float(res)
    ijk = jnp.concatenate([i0, i1, i2], axis=0)                # (3, tile_n)
    off = (ijk + 0.5) / float(res) - 0.5

    out_ref[0] = o + off                                       # (3, tile_n)


def run_generator(table, indices, noise, params, *, res, rnd_dim,
                  n_points, tile_n):
    """table: (b, hidden, cells) bf16 (= W1x@x + b1), indices: (b, n_points) i32,
    noise: (b, rnd_dim, n_points) f32.
    Returns out (b, 3, n_points) f32 and reg (b, n_points) f32."""
    w1r, w2, b2 = params
    b, hidden, cells = table.shape

    assert n_points % tile_n == 0 and tile_n % 128 == 0
    n_tiles = n_points // tile_n
    idx3 = indices.reshape(b, 1, n_points).astype(jnp.int32)

    kernel = functools.partial(_generator_kernel, rnd_dim=rnd_dim, res=res,
                               sqrt3_over_s=math.sqrt(3.0) / res)

    out, reg3 = pl.pallas_call(
        kernel,
        out_shape=(jax.ShapeDtypeStruct((b, 3, n_points), jnp.float32),
                   jax.ShapeDtypeStruct((b, 1, n_points), jnp.float32)),
        grid_spec=pltpu.PrefetchScalarGridSpec(
            num_scalar_prefetch=0,
            grid=(b, n_tiles),
            in_specs=[
                pl.BlockSpec((1, 1, tile_n),       lambda bi, ti: (bi, 0, ti)),
                pl.BlockSpec((1, rnd_dim, tile_n), lambda bi, ti: (bi, 0, ti)),
                pl.BlockSpec((1, hidden, cells),   lambda bi, ti: (bi, 0, 0)),
                pl.BlockSpec((rnd_dim, hidden, 1), lambda bi, ti: (0, 0, 0)),
                pl.BlockSpec((3, hidden),          lambda bi, ti: (0, 0)),
                pl.BlockSpec((3, 1),               lambda bi, ti: (0, 0)),
            ],
            out_specs=(pl.BlockSpec((1, 3, tile_n), lambda bi, ti: (bi, 0, ti)),
                       pl.BlockSpec((1, 1, tile_n), lambda bi, ti: (bi, 0, ti))),
        ),
        compiler_params=pltpu.CompilerParams(
            dimension_semantics=("parallel", "parallel"),
            # VMEM footprint is tiny here (onehot cells*tile_n*2B dominates);
            # re-budget against 64 MiB if res or tile_n grows (v7x).
            vmem_limit_bytes=32 * 1024 * 1024),
    )(idx3, noise, table, w1r, w2, b2)

    return out, reg3[:, 0, :]


# ----------------------------------------------------------------------------
# Full forward (PointCloudGenerator.forward)
# ----------------------------------------------------------------------------
def point_cloud_generator_forward(x, dens, n_points, params, *, res, rnd_dim,
                                  noise_key, tile_n):
    w1x, b1, w1r, w2, b2 = params
    b, c = x.shape[0], x.shape[1]
    cells = res ** 3
    assert x.shape[2] * x.shape[3] * x.shape[4] == cells

    x_flat = x.reshape(b, c, cells).astype(jnp.float32)        # (b, c, cells)

    # density -> per-cell counts -> per-point cell indices (plain-JAX glue)
    n_cnt = dens_sample(dens, n_points)                        # (b, cells)
    indices = expand_indices(n_cnt, n_points)                  # (b, n_points)

    # Fold the first MLP layer into the tiny gather table (once per batch, XLA):
    #   T[b] = W1x @ x_flat[b] + b1   -> (hidden, cells), bf16 MXU operand.
    table = (jnp.einsum("hc,bcv->bhv", w1x, x_flat) + b1[None]).astype(jnp.bfloat16)

    # uniform noise in [-1, 1) (replaces torch.rand * 2 - 1)
    noise = jax.random.uniform(noise_key, (b, rnd_dim, n_points),
                               jnp.float32, minval=-1.0, maxval=1.0)

    return run_generator(table, indices, noise, (w1r, w2, b2), res=res,
                         rnd_dim=rnd_dim, n_points=n_points, tile_n=tile_n)


def init_generator_params(key, c, rnd_dim, hidden):
    # Channels-first weights.  w1x/b1 stay f32 (folded into the table in XLA),
    # w2 is stored bf16 (MXU operand), biases f32.
    # TODO(synk): the PyTorch `generator` submodule is arbitrary; realized here
    # as Conv1d(c+rnd_dim->hidden) -> ReLU -> Conv1d(hidden->3).
    k1, k2, k3, k4, k5 = jax.random.split(key, 5)
    w1x = jax.random.normal(k1, (hidden, c), jnp.float32) * 0.1
    b1 = jax.random.normal(k3, (hidden, 1), jnp.float32) * 0.01
    w1r = jax.random.normal(k2, (rnd_dim, hidden, 1), jnp.float32) * 0.1
    w2 = (jax.random.normal(k4, (3, hidden), jnp.float32) * 0.1).astype(jnp.bfloat16)
    b2 = jax.random.normal(k5, (3, 1), jnp.float32) * 0.01
    return (w1x, b1, w1r, w2, b2)


if __name__ == "__main__":
    b, c = 2, 4
    res = 8                 # grid resolution -> cells = res^3 = 512
    rnd_dim = 2
    hidden = 32
    n_points = 512
    tile_n = 512            # = n_points for the toy case; 1024-2048 at real sizes

    root = jax.random.PRNGKey(0)
    kx, kd, kp, kn = jax.random.split(root, 4)

    x = jax.random.normal(kx, (b, c, res, res, res), jnp.float32)
    dens = jax.random.uniform(kd, (b, 1, res, res, res), jnp.float32)
    params = init_generator_params(kp, c, rnd_dim, hidden)

    out, reg = point_cloud_generator_forward(
        x, dens, n_points, params, res=res, rnd_dim=rnd_dim,
        noise_key=kn, tile_n=tile_n)
    out = jax.block_until_ready(out)
    reg = jax.block_until_ready(reg)

    assert out.shape == (b, 3, n_points), out.shape
    assert reg.shape == (b, n_points), reg.shape
    assert bool(jnp.all(jnp.isfinite(out))) and bool(jnp.all(jnp.isfinite(reg)))
    assert bool(jnp.all(reg >= 0.0))

    # Plumbing self-check: reg must equal clamp(||out - offset|| - sqrt(3)/res, 0)
    # for the same (deterministic) cell indices, regardless of the noise draw.
    cells = res ** 3
    n_cnt = dens_sample(dens, n_points)
    indices = expand_indices(n_cnt, n_points)
    o_flat = ((meshgrid(res) + 0.5) / res - 0.5).reshape(3, cells)
    off_ref = jnp.transpose(o_flat[:, indices], (1, 0, 2))        # (b, 3, N)
    reg_chk = jnp.maximum(
        jnp.linalg.norm(out - off_ref, axis=1) - math.sqrt(3.0) / res, 0.0)
    assert bool(jnp.allclose(reg, reg_chk, atol=5e-3)), "reg/offset plumbing mismatch"

    print("KERNEL_OK")
</pallas_src>

<mosaic_0001>
module attributes {stable_mosaic.version = 11 : i64} {
  func.func @_generator_kernel(%arg0: i32, %arg1: i32, %arg2: memref<1x1x512xi32, #tpu.memory_space<vmem>>, %arg3: memref<1x2x512xf32, #tpu.memory_space<vmem>>, %arg4: memref<1x32x512xbf16, #tpu.memory_space<vmem>>, %arg5: memref<2x32x1xf32, #tpu.memory_space<vmem>>, %arg6: memref<3x32xbf16, #tpu.memory_space<vmem>>, %arg7: memref<3x1xf32, #tpu.memory_space<vmem>>, %arg8: memref<1x3x512xf32, #tpu.memory_space<vmem>>, %arg9: memref<1x1x512xf32, #tpu.memory_space<vmem>>) attributes {dimension_semantics = [#tpu.dimension_semantics<parallel>, #tpu.dimension_semantics<parallel>], iteration_bounds = array<i64: 2, 1>, scalar_prefetch = 0 : i64, scratch_operands = 0 : i64, tpu.core_type = #tpu.core_type<tc>, window_params = [{transform_indices = @transform_0, window_bounds = array<i64: 1, 1, 512>}, {transform_indices = @transform_1, window_bounds = array<i64: 1, 2, 512>}, {transform_indices = @transform_2, window_bounds = array<i64: 1, 32, 512>}, {pipeline_mode = #tpu.pipeline_mode<synchronous>, transform_indices = @transform_3, window_bounds = array<i64: 2, 32, 1>}, {pipeline_mode = #tpu.pipeline_mode<synchronous>, transform_indices = @transform_4, window_bounds = array<i64: 3, 32>}, {pipeline_mode = #tpu.pipeline_mode<synchronous>, transform_indices = @transform_5, window_bounds = array<i64: 3, 1>}, {transform_indices = @transform_6, window_bounds = array<i64: 1, 3, 512>}, {transform_indices = @transform_7, window_bounds = array<i64: 1, 1, 512>}]} {
    %c0 = arith.constant 0 : index
    %c0_0 = arith.constant 0 : index
    %c0_1 = arith.constant 0 : index
    %0 = vector.load %arg2[%c0, %c0_0, %c0_1] : memref<1x1x512xi32, #tpu.memory_space<vmem>>, vector<1x1x512xi32>
    %1 = vector.shape_cast %0 : vector<1x1x512xi32> to vector<1x512xi32>
    %2 = tpu.iota {dimensions = array<i32: 0>} : vector<512x512xi32>
    %3 = vector.broadcast %1 : vector<1x512xi32> to vector<512x512xi32>
    %4 = arith.cmpi eq, %2, %3 : vector<512x512xi32>
    %cst = arith.constant 1.000000e+00 : f32
    %cst_2 = arith.constant 0.000000e+00 : f32
    %5 = vector.broadcast %cst : f32 to vector<512x512xf32>
    %6 = vector.broadcast %cst_2 : f32 to vector<512x512xf32>
    %7 = arith.select %4, %5, %6 : vector<512x512xi1>, vector<512x512xf32>
    %8 = arith.truncf %7 : vector<512x512xf32> to vector<512x512xbf16>
    %c0_3 = arith.constant 0 : index
    %c0_4 = arith.constant 0 : index
    %c0_5 = arith.constant 0 : index
    %9 = vector.load %arg4[%c0_3, %c0_4, %c0_5] : memref<1x32x512xbf16, #tpu.memory_space<vmem>>, vector<1x32x512xbf16>
    %10 = vector.shape_cast %9 : vector<1x32x512xbf16> to vector<32x512xbf16>
    %cst_6 = arith.constant dense<0.000000e+00> : vector<32x512xf32>
    %11 = tpu.matmul %10, %8, %cst_6 {dimension_numbers = #tpu.dot_dimension_numbers<[1], [0], [0], [1], [0, 0, 1, 1], [], []>} : vector<32x512xbf16>, vector<512x512xbf16>, vector<32x512xf32> -> vector<32x512xf32>
    %c0_7 = arith.constant 0 : index
    %c0_8 = arith.constant 0 : index
    %c0_9 = arith.constant 0 : index
    %12 = vector.load %arg3[%c0_7, %c0_8, %c0_9] : memref<1x2x512xf32, #tpu.memory_space<vmem>>, vector<1x2x512xf32>
    %13 = vector.shape_cast %12 : vector<1x2x512xf32> to vector<2x512xf32>
    %c0_10 = arith.constant 0 : index
    %c0_11 = arith.constant 0 : index
    %c0_12 = arith.constant 0 : index
    %14 = vector.load %arg5[%c0_10, %c0_11, %c0_12] : memref<2x32x1xf32, #tpu.memory_space<vmem>>, vector<1x32x1xf32>
    %15 = vector.shape_cast %14 : vector<1x32x1xf32> to vector<32x1xf32>
    %16 = vector.extract_strided_slice %13 {offsets = [0, 0], sizes = [1, 512], strides = [1, 1]} : vector<2x512xf32> to vector<1x512xf32>
    %17 = vector.broadcast %15 : vector<32x1xf32> to vector<32x512xf32>
    %18 = vector.broadcast %16 : vector<1x512xf32> to vector<32x512xf32>
    %19 = arith.mulf %17, %18 : vector<32x512xf32>
    %20 = arith.addf %11, %19 : vector<32x512xf32>
    %c1 = arith.constant 1 : index
    %c0_13 = arith.constant 0 : index
    %c0_14 = arith.constant 0 : index
    %21 = vector.load %arg5[%c1, %c0_13, %c0_14] : memref<2x32x1xf32, #tpu.memory_space<vmem>>, vector<1x32x1xf32>
    %22 = vector.shape_cast %21 : vector<1x32x1xf32> to vector<32x1xf32>
    %23 = vector.extract_strided_slice %13 {offsets = [1, 0], sizes = [1, 512], strides = [1, 1]} : vector<2x512xf32> to vector<1x512xf32>
    %24 = vector.broadcast %22 : vector<32x1xf32> to vector<32x512xf32>
    %25 = vector.broadcast %23 : vector<1x512xf32> to vector<32x512xf32>
    %26 = arith.mulf %24, %25 : vector<32x512xf32>
    %27 = arith.addf %20, %26 : vector<32x512xf32>
    %cst_15 = arith.constant 0.000000e+00 : f32
    %28 = vector.broadcast %cst_15 : f32 to vector<32x512xf32>
    %29 = arith.maximumf %27, %28 : vector<32x512xf32>
    %30 = arith.truncf %29 : vector<32x512xf32> to vector<32x512xbf16>
    %c0_16 = arith.constant 0 : index
    %c0_17 = arith.constant 0 : index
    %31 = vector.load %arg6[%c0_16, %c0_17] : memref<3x32xbf16, #tpu.memory_space<vmem>>, vector<3x32xbf16>
    %cst_18 = arith.constant dense<0.000000e+00> : vector<3x512xf32>
    %32 = tpu.matmul %31, %30, %cst_18 {dimension_numbers = #tpu.dot_dimension_numbers<[1], [0], [0], [1], [0, 0, 1, 1], [], []>} : vector<3x32xbf16>, vector<32x512xbf16>, vector<3x512xf32> -> vector<3x512xf32>
    %c0_19 = arith.constant 0 : index
    %c0_20 = arith.constant 0 : index
    %33 = vector.load %arg7[%c0_19, %c0_20] : memref<3x1xf32, #tpu.memory_space<vmem>>, vector<3x1xf32>
    %34 = vector.broadcast %33 : vector<3x1xf32> to vector<3x512xf32>
    %35 = arith.addf %32, %34 : vector<3x512xf32>
    %36 = vector.extract_strided_slice %35 {offsets = [0, 0], sizes = [1, 512], strides = [1, 1]} : vector<3x512xf32> to vector<1x512xf32>
    %37 = vector.extract_strided_slice %35 {offsets = [1, 0], sizes = [1, 512], strides = [1, 1]} : vector<3x512xf32> to vector<1x512xf32>
    %38 = vector.extract_strided_slice %35 {offsets = [2, 0], sizes = [1, 512], strides = [1, 1]} : vector<3x512xf32> to vector<1x512xf32>
    %39 = arith.mulf %36, %36 : vector<1x512xf32>
    %40 = arith.mulf %37, %37 : vector<1x512xf32>
    %41 = arith.addf %39, %40 : vector<1x512xf32>
    %42 = arith.mulf %38, %38 : vector<1x512xf32>
    %43 = arith.addf %41, %42 : vector<1x512xf32>
    %44 = math.sqrt %43 : vector<1x512xf32>
    %cst_21 = arith.constant 0.216506347 : f32
    %45 = vector.broadcast %cst_21 : f32 to vector<1x512xf32>
    %46 = arith.subf %44, %45 : vector<1x512xf32>
    %cst_22 = arith.constant 0.000000e+00 : f32
    %47 = vector.broadcast %cst_22 : f32 to vector<1x512xf32>
    %48 = arith.maximumf %46, %47 : vector<1x512xf32>
    %c0_23 = arith.constant 0 : index
    %c0_24 = arith.constant 0 : index
    %c0_25 = arith.constant 0 : index
    %49 = vector.load %arg9[%c0_23, %c0_24, %c0_25] : memref<1x1x512xf32, #tpu.memory_space<vmem>>, vector<1x1x512xf32>
    %50 = vector.shape_cast %49 : vector<1x1x512xf32> to vector<1x512xf32>
    %51 = vector.shape_cast %48 : vector<1x512xf32> to vector<1x1x512xf32>
    tpu.vector_store %arg9[%c0_23, %c0_24, %c0_25], %51 {strides = array<i32>} : memref<1x1x512xf32, #tpu.memory_space<vmem>>, vector<1x1x512xf32>,
    %52 = arith.sitofp %1 : vector<1x512xi32> to vector<1x512xf32>
    %cst_26 = arith.constant 6.400000e+01 : f32
    %53 = vector.broadcast %cst_26 : f32 to vector<1x512xf32>
    %54 = arith.divf %52, %53 : vector<1x512xf32>
    %55 = math.floor %54 : vector<1x512xf32>
    %cst_27 = arith.constant 6.400000e+01 : f32
    %56 = vector.broadcast %cst_27 : f32 to vector<1x512xf32>
    %57 = arith.mulf %55, %56 : vector<1x512xf32>
    %58 = arith.subf %52, %57 : vector<1x512xf32>
    %cst_28 = arith.constant 8.000000e+00 : f32
    %59 = vector.broadcast %cst_28 : f32 to vector<1x512xf32>
    %60 = arith.divf %58, %59 : vector<1x512xf32>
    %61 = math.floor %60 : vector<1x512xf32>
    %cst_29 = arith.constant 8.000000e+00 : f32
    %62 = vector.broadcast %cst_29 : f32 to vector<1x512xf32>
    %63 = arith.mulf %61, %62 : vector<1x512xf32>
    %64 = arith.subf %58, %63 : vector<1x512xf32>
    %65 = tpu.concatenate %55, %61, %64 in 0 : vector<1x512xf32>, vector<1x512xf32>, vector<1x512xf32> -> vector<3x512xf32>
    %cst_30 = arith.constant 5.000000e-01 : f32
    %66 = vector.broadcast %cst_30 : f32 to vector<3x512xf32>
    %67 = arith.addf %65, %66 : vector<3x512xf32>
    %cst_31 = arith.constant 8.000000e+00 : f32
    %68 = vector.broadcast %cst_31 : f32 to vector<3x512xf32>
    %69 = arith.divf %67, %68 : vector<3x512xf32>
    %cst_32 = arith.constant 5.000000e-01 : f32
    %70 = vector.broadcast %cst_32 : f32 to vector<3x512xf32>
    %71 = arith.subf %69, %70 : vector<3x512xf32>
    %72 = arith.addf %35, %71 : vector<3x512xf32>
    %c0_33 = arith.constant 0 : index
    %c0_34 = arith.constant 0 : index
    %c0_35 = arith.constant 0 : index
    %73 = vector.load %arg8[%c0_33, %c0_34, %c0_35] : memref<1x3x512xf32, #tpu.memory_space<vmem>>, vector<1x3x512xf32>
    %74 = vector.shape_cast %73 : vector<1x3x512xf32> to vector<3x512xf32>
    %75 = vector.shape_cast %72 : vector<3x512xf32> to vector<1x3x512xf32>
    tpu.vector_store %arg8[%c0_33, %c0_34, %c0_35], %75 {strides = array<i32>} : memref<1x3x512xf32, #tpu.memory_space<vmem>>, vector<1x3x512xf32>,
    return
  }
  func.func @transform_0(%arg0: i32, %arg1: i32) -> (i32, i32, i32) {
    %c0_i32 = arith.constant 0 : i32
    %c0_i32_0 = arith.constant 0 : i32
    return %arg0, %c0_i32, %arg1 : i32, i32, i32
  }
  func.func @transform_1(%arg0: i32, %arg1: i32) -> (i32, i32, i32) {
    %c0_i32 = arith.constant 0 : i32
    %c0_i32_0 = arith.constant 0 : i32
    return %arg0, %c0_i32, %arg1 : i32, i32, i32
  }
  func.func @transform_2(%arg0: i32, %arg1: i32) -> (i32, i32, i32) {
    %c0_i32 = arith.constant 0 : i32
    %c0_i32_0 = arith.constant 0 : i32
    %c0_i32_1 = arith.constant 0 : i32
    return %arg0, %c0_i32, %c0_i32_0 : i32, i32, i32
  }
  func.func @transform_3(%arg0: i32, %arg1: i32) -> (i32, i32, i32) {
    %c0_i32 = arith.constant 0 : i32
    %c0_i32_0 = arith.constant 0 : i32
    %c0_i32_1 = arith.constant 0 : i32
    %c0_i32_2 = arith.constant 0 : i32
    return %c0_i32, %c0_i32_0, %c0_i32_1 : i32, i32, i32
  }
  func.func @transform_4(%arg0: i32, %arg1: i32) -> (i32, i32) {
    %c0_i32 = arith.constant 0 : i32
    %c0_i32_0 = arith.constant 0 : i32
    %c0_i32_1 = arith.constant 0 : i32
    return %c0_i32, %c0_i32_0 : i32, i32
  }
  func.func @transform_5(%arg0: i32, %arg1: i32) -> (i32, i32) {
    %c0_i32 = arith.constant 0 : i32
    %c0_i32_0 = arith.constant 0 : i32
    %c0_i32_1 = arith.constant 0 : i32
    return %c0_i32, %c0_i32_0 : i32, i32
  }
  func.func @transform_6(%arg0: i32, %arg1: i32) -> (i32, i32, i32) {
    %c0_i32 = arith.constant 0 : i32
    %c0_i32_0 = arith.constant 0 : i32
    return %arg0, %c0_i32, %arg1 : i32, i32, i32
  }
  func.func @transform_7(%arg0: i32, %arg1: i32) -> (i32, i32, i32) {
    %c0_i32 = arith.constant 0 : i32
    %c0_i32_0 = arith.constant 0 : i32
    return %arg0, %c0_i32, %arg1 : i32, i32, i32
  }
}

</mosaic_0001>

<llo_original>
// kernel: tpu_custom_call.1
$region0: #{tpu_custom_call.1}
  #allocation0 [shape = 'u32[]', space=smem, size = 0x4, offset = 0x4, fixed_abs, tag = 'smem constant byte address 0x4 - core index']
  #allocation1 [shape = 'u32[72,128]{1,0:T(1,128)}', space=vmem, size = 0x9000, scoped, tag = 'internal scratch']
  %s0 = inlined_call_operand.vmem [shape: s32[2,1,512], index: 0, kind: input, shape index: {}]
  %s1 = inlined_call_operand.vmem [shape: f32[2,2,512], index: 1, kind: input, shape index: {}]
  %s2 = inlined_call_operand.hbm [shape: bf16[2,32,512], index: 2, kind: input, shape index: {}]
  %s3 = inlined_call_operand.vmem [shape: f32[2,32,1], index: 3, kind: input, shape index: {}]
  %s4 = inlined_call_operand.vmem [shape: bf16[3,32], index: 4, kind: input, shape index: {}]
  %s5 = inlined_call_operand.vmem [shape: f32[3,1], index: 5, kind: input, shape index: {}]
  %s6 = inlined_call_operand.vmem [shape: f32[2,3,512], index: 6, kind: output, shape index: {0}]
  %s7 = inlined_call_operand.hbm [shape: f32[2,1,512], index: 7, kind: output, shape index: {1}]
  %8 = xla_tuple %s6, %s7
  %s9 = sld [smem:[#allocation0]]
  $region69: #{tpu_custom_call.1} parent=0
    _
  %s11 = ssub.s32 1, %s9
  %s12 = scalar_select 0, %s11, %s9
  $region1: #{tpu_custom_call.1} parent=0
    #allocation2 [shape = 'u8[65536]{0}', space=vmem, size = 0x10000, scoped, tag = 'input window, operand 2']
    #allocation3 [shape = 's32[2]{0}', space=sflag, size = 0x8, scoped, tag = 'scoped memory for tpu_custom_call.1']
    #allocation4 [shape = 's32[2]{0}', space=sflag, size = 0x8, scoped, tag = 'scoped memory for tpu_custom_call.1']
    #allocation5 [shape = 'u8[4096]{0}', space=vmem, size = 0x1000, scoped, tag = 'output window, operand 1']
    %13 = vsyncpa [#allocation3], 0
    %s14 = scalar_lea.sflag [#allocation3], 1
    %15 = vsyncpa %s14, 0
    %16 = vsyncpa [#allocation4], 0
    %s17 = scalar_lea.sflag [#allocation4], 1
    %18 = vsyncpa %s17, 0
    loop: start=0, step=1, limit=4
    $region2: #{tpu_custom_call.1} parent=1 // loop_pre_header
      _
    $region3: #{tpu_custom_call.1} parent=1 // loop_header
      %s20 = sphi 0, %s24
      %p21 = scmp.ge.s32.totalorder %s20, 4
      %s27 = sphi 0, %s39
      %s28 = sphi 0, %s35
      %s29 = sphi 0, %s27
      %s30 = sphi 0, %s28
      %s31 = sphi 0, %s29
      %s32 = sphi 0, %s30
      %s44 = sphi 0, %s46
      %s47 = sphi 0, %s44
      %s48 = sphi 0, %s47
      %s64 = sphi 0, %s48
      %s72 = sphi 0, %s74
      %s75 = sphi 0, %s72
      %s76 = sphi 0, %s75
      %s92 = sphi 0, %s76
      %s98 = sphi 0, %s100
      %s101 = sphi 0, %s98
      %s102 = sphi 0, %s101
      %s118 = sphi 0, %s102
      %s122 = sphi 0, %s122
      %s124 = sphi 0, %s122
      %s125 = sphi 0, %s124
      %s139 = sphi 0, %s125
      %s143 = sphi 0, %s143
      %s145 = sphi 0, %s143
      %s146 = sphi 0, %s145
      %s160 = sphi 0, %s146
      %s164 = sphi 0, %s164
      %s166 = sphi 0, %s164
      %s167 = sphi 0, %s166
      %s181 = sphi 0, %s167
      %s189 = sphi 0, %s191
      %s192 = sphi 0, %s189
      %s193 = sphi 0, %s192
      %s209 = sphi 0, %s193
      %s217 = sphi 0, %s219
      %s220 = sphi 0, %s217
      %s221 = sphi 0, %s220
      %s237 = sphi 0, %s221
    $region4: #{tpu_custom_call.1} parent=1 // loop_header_branch
      %23 = sbr.rel (%p21) target = $region8
    $region5: #{tpu_custom_call.1} parent=1 // loop_body
      %s25 = ssub.s32 %s20, 1
      %s26 = ssub.s32 %s20, 2
      %s33 = sadd.s32 1, %s28
      %p34 = scmp.ge.s32.totalorder %s33, 1
      %s35 = scalar_select %p34, 0, %s33
      %s36 = sadd.s32 1, %s27
      %s37 = scalar_select %p34, %s36, %s27
      %p38 = scmp.ge.s32.totalorder %s37, 2
      %s39 = scalar_select %p38, 0, %s37
      %s40 = ssub.s32 %s27, %s39
      %s41 = ssub.s32 %s28, %s35
      %s42 = sor.u32 %s40, %s41
      %p43 = scmp.eq.s32.totalorder %s42, 0
      %s45 = sadd.s32 %s44, 1
      %s46 = scalar_select %p43, %s44, %s45
      %p49 = pneg %p43
      %p50 = scmp.eq.s32.totalorder %s20, 1
      %p51 = por %p49, %p50
      %p52 = scmp.ne.s32.totalorder %s44, %s47
      %p53 = scmp.eq.s32.totalorder %s20, 0
      %p54 = por %p52, %p53
      %p55 = scmp.ne.s32.totalorder %s44, %s47
      %p56 = scmp.eq.s32.totalorder %s25, 1
      %p57 = por %p55, %p56
      %p58 = scmp.ne.s32.totalorder %s47, %s48
      %p59 = scmp.eq.s32.totalorder %s25, 0
      %p60 = por %p58, %p59
      %p61 = scmp.ne.s32.totalorder %s47, %s48
      %p62 = scmp.eq.s32.totalorder %s26, 1
      %p63 = por %p61, %p62
      %p65 = scmp.ne.s32.totalorder %s48, %s64
      %p66 = scmp.eq.s32.totalorder %s26, 0
      %p67 = por %p65, %p66
      %s68 = ssub.s32 %s27, %s39
      %s69 = ssub.s32 %s28, %s35
      %s70 = sor.u32 %s68, %s69
      %p71 = scmp.eq.s32.totalorder %s70, 0
      %s73 = sadd.s32 %s72, 1
      %s74 = scalar_select %p71, %s72, %s73
      %p77 = pneg %p71
      %p78 = scmp.eq.s32.totalorder %s20, 1
      %p79 = por %p77, %p78
      %p80 = scmp.ne.s32.totalorder %s72, %s75
      %p81 = scmp.eq.s32.totalorder %s20, 0
      %p82 = por %p80, %p81
      %p83 = scmp.ne.s32.totalorder %s72, %s75
      %p84 = scmp.eq.s32.totalorder %s25, 1
      %p85 = por %p83, %p84
      %p86 = scmp.ne.s32.totalorder %s75, %s76
      %p87 = scmp.eq.s32.totalorder %s25, 0
      %p88 = por %p86, %p87
      %p89 = scmp.ne.s32.totalorder %s75, %s76
      %p90 = scmp.eq.s32.totalorder %s26, 1
      %p91 = por %p89, %p90
      %p93 = scmp.ne.s32.totalorder %s76, %s92
      %p94 = scmp.eq.s32.totalorder %s26, 0
      %p95 = por %p93, %p94
      %s96 = ssub.s32 %s27, %s39
      %p97 = scmp.eq.s32.totalorder %s96, 0
      %s99 = sadd.s32 %s98, 1
      %s100 = scalar_select %p97, %s98, %s99
      %p103 = pneg %p97
      %p104 = scmp.eq.s32.totalorder %s20, 1
      %p105 = por %p103, %p104
      %p106 = scmp.ne.s32.totalorder %s98, %s101
      %p107 = scmp.eq.s32.totalorder %s20, 0
      %p108 = por %p106, %p107
      %p109 = scmp.ne.s32.totalorder %s98, %s101
      %p110 = scmp.eq.s32.totalorder %s25, 1
      %p111 = por %p109, %p110
      %p112 = scmp.ne.s32.totalorder %s101, %s102
      %p113 = scmp.eq.s32.totalorder %s25, 0
      %p114 = por %p112, %p113
      %p115 = scmp.ne.s32.totalorder %s101, %s102
      %p116 = scmp.eq.s32.totalorder %s26, 1
      %p117 = por %p115, %p116
      %p119 = scmp.ne.s32.totalorder %s102, %s118
      %p120 = scmp.eq.s32.totalorder %s26, 0
      %p121 = por %p119, %p120
      %s123 = sadd.s32 %s122, 1
      %p126 = scmp.eq.s32.totalorder %s20, 1
      %p127 = scmp.ne.s32.totalorder %s122, %s124
      %p128 = scmp.eq.s32.totalorder %s20, 0
      %p129 = por %p127, %p128
      %p130 = scmp.ne.s32.totalorder %s122, %s124
      %p131 = scmp.eq.s32.totalorder %s25, 1
      %p132 = por %p130, %p131
      %p133 = scmp.ne.s32.totalorder %s124, %s125
      %p134 = scmp.eq.s32.totalorder %s25, 0
      %p135 = por %p133, %p134
      %p136 = scmp.ne.s32.totalorder %s124, %s125
      %p137 = scmp.eq.s32.totalorder %s26, 1
      %p138 = por %p136, %p137
      %p140 = scmp.ne.s32.totalorder %s125, %s139
      %p141 = scmp.eq.s32.totalorder %s26, 0
      %p142 = por %p140, %p141
      %s144 = sadd.s32 %s143, 1
      %p147 = scmp.eq.s32.totalorder %s20, 1
      %p148 = scmp.ne.s32.totalorder %s143, %s145
      %p149 = scmp.eq.s32.totalorder %s20, 0
      %p150 = por %p148, %p149
      %p151 = scmp.ne.s32.totalorder %s143, %s145
      %p152 = scmp.eq.s32.totalorder %s25, 1
      %p153 = por %p151, %p152
      %p154 = scmp.ne.s32.totalorder %s145, %s146
      %p155 = scmp.eq.s32.totalorder %s25, 0
      %p156 = por %p154, %p155
      %p157 = scmp.ne.s32.totalorder %s145, %s146
      %p158 = scmp.eq.s32.totalorder %s26, 1
      %p159 = por %p157, %p158
      %p161 = scmp.ne.s32.totalorder %s146, %s160
      %p162 = scmp.eq.s32.totalorder %s26, 0
      %p163 = por %p161, %p162
      %s165 = sadd.s32 %s164, 1
      %p168 = scmp.eq.s32.totalorder %s20, 1
      %p169 = scmp.ne.s32.totalorder %s164, %s166
      %p170 = scmp.eq.s32.totalorder %s20, 0
      %p171 = por %p169, %p170
      %p172 = scmp.ne.s32.totalorder %s164, %s166
      %p173 = scmp.eq.s32.totalorder %s25, 1
      %p174 = por %p172, %p173
      %p175 = scmp.ne.s32.totalorder %s166, %s167
      %p176 = scmp.eq.s32.totalorder %s25, 0
      %p177 = por %p175, %p176
      %p178 = scmp.ne.s32.totalorder %s166, %s167
      %p179 = scmp.eq.s32.totalorder %s26, 1
      %p180 = por %p178, %p179
      %p182 = scmp.ne.s32.totalorder %s167, %s181
      %p183 = scmp.eq.s32.totalorder %s26, 0
      %p184 = por %p182, %p183
      %s185 = ssub.s32 %s27, %s39
      %s186 = ssub.s32 %s28, %s35
      %s187 = sor.u32 %s185, %s186
      %p188 = scmp.eq.s32.totalorder %s187, 0
      %s190 = sadd.s32 %s189, 1
      %s191 = scalar_select %p188, %s189, %s190
      %p194 = pneg %p188
      %p195 = scmp.eq.s32.totalorder %s20, 1
      %p196 = por %p194, %p195
      %p197 = scmp.ne.s32.totalorder %s189, %s192
      %p198 = scmp.eq.s32.totalorder %s20, 0
      %p199 = por %p197, %p198
      %p200 = scmp.ne.s32.totalorder %s189, %s192
      %p201 = scmp.eq.s32.totalorder %s25, 1
      %p202 = por %p200, %p201
      %p203 = scmp.ne.s32.totalorder %s192, %s193
      %p204 = scmp.eq.s32.totalorder %s25, 0
      %p205 = por %p203, %p204
      %p206 = scmp.ne.s32.totalorder %s192, %s193
      %p207 = scmp.eq.s32.totalorder %s26, 1
      %p208 = por %p206, %p207
      %p210 = scmp.ne.s32.totalorder %s193, %s209
      %p211 = scmp.eq.s32.totalorder %s26, 0
      %p212 = por %p210, %p211
      %s213 = ssub.s32 %s27, %s39
      %s214 = ssub.s32 %s28, %s35
      %s215 = sor.u32 %s213, %s214
      %p216 = scmp.eq.s32.totalorder %s215, 0
      %s218 = sadd.s32 %s217, 1
      %s219 = scalar_select %p216, %s217, %s218
      %p222 = pneg %p216
      %p223 = scmp.eq.s32.totalorder %s20, 1
      %p224 = por %p222, %p223
      %p225 = scmp.ne.s32.totalorder %s217, %s220
      %p226 = scmp.eq.s32.totalorder %s20, 0
      %p227 = por %p225, %p226
      %p228 = scmp.ne.s32.totalorder %s217, %s220
      %p229 = scmp.eq.s32.totalorder %s25, 1
      %p230 = por %p228, %p229
      %p231 = scmp.ne.s32.totalorder %s220, %s221
      %p232 = scmp.eq.s32.totalorder %s25, 0
      %p233 = por %p231, %p232
      %p234 = scmp.ne.s32.totalorder %s220, %s221
      %p235 = scmp.eq.s32.totalorder %s26, 1
      %p236 = por %p234, %p235
      %p238 = scmp.ne.s32.totalorder %s221, %s237
      %p239 = scmp.eq.s32.totalorder %s26, 0
      %p240 = por %p238, %p239
      %p241 = scmp.le.s32.totalorder 1, %s20
      %p242 = scmp.lt.s32.totalorder %s20, 3
      %p243 = pnand %p241, %p242
      %p244 = pneg %p243
      // Predicated region
      $region9: #{tpu_custom_call.1} parent=5 // pred_check
        _
      $region10: #{tpu_custom_call.1} parent=5 // pred_check_branch
        %246 = sbr.rel (%p243) target = $region12
      $region11: #{tpu_custom_call.1} parent=5 // pred_region
        %s247 = ssub.s32 %s20, 1
        // Predicated region
        $region13: #{tpu_custom_call.1} parent=11 // pred_check
          %p248 = pneg %p135
        $region14: #{tpu_custom_call.1} parent=11 // pred_check_branch
          %250 = sbr.rel (%p248) target = $region16
        $region15: #{tpu_custom_call.1} parent=11 // pred_region
          _
        $region16: #{tpu_custom_call.1} parent=11 // pred_fallthru
          _
        // Predicated region
        $region17: #{tpu_custom_call.1} parent=11 // pred_check
          %p251 = pneg %p156
        $region18: #{tpu_custom_call.1} parent=11 // pred_check_branch
          %253 = sbr.rel (%p251) target = $region20
        $region19: #{tpu_custom_call.1} parent=11 // pred_region
          _
        $region20: #{tpu_custom_call.1} parent=11 // pred_fallthru
          _
        // Predicated region
        $region21: #{tpu_custom_call.1} parent=11 // pred_check
          %p254 = pneg %p177
        $region22: #{tpu_custom_call.1} parent=11 // pred_check_branch
          %256 = sbr.rel (%p254) target = $region24
        $region23: #{tpu_custom_call.1} parent=11 // pred_region
          _
        $region24: #{tpu_custom_call.1} parent=11 // pred_fallthru
          _
      $region12: #{tpu_custom_call.1} parent=5 // pred_fallthru
        _
      %p257 = scmp.lt.s32.totalorder %s20, 2
      // Predicated region
      $region25: #{tpu_custom_call.1} parent=5 // pred_check
        %p258 = pneg %p257
      $region26: #{tpu_custom_call.1} parent=5 // pred_check_branch
        %260 = sbr.rel (%p258) target = $region28
      $region27: #{tpu_custom_call.1} parent=5 // pred_region
        // Predicated region
        $region29: #{tpu_custom_call.1} parent=27 // pred_check
          %p261 = pneg %p54
        $region30: #{tpu_custom_call.1} parent=27 // pred_check_branch
          %263 = sbr.rel (%p261) target = $region32
        $region31: #{tpu_custom_call.1} parent=27 // pred_region
          %s264 = smul.u32 4, %s28
          %p265 = scmp.lt.s32.totalorder %s27, 1
          %s266 = scalar_select %p265, %s27, 1
          %p267 = scmp.lt.s32.totalorder %s264, 3
          %s268 = scalar_select %p267, %s264, 3
          %s269 = smul.addr %s266, 4
          %s270 = sadd.s32 %s268, %s269
          %s271 = scalar_lea.vmem %s0, %s270
          %s272 = smul.u32 4, %s28
        $region32: #{tpu_custom_call.1} parent=27 // pred_fallthru
          _
        // Predicated region
        $region33: #{tpu_custom_call.1} parent=27 // pred_check
          %p273 = pneg %p82
        $region34: #{tpu_custom_call.1} parent=27 // pred_check_branch
          %275 = sbr.rel (%p273) target = $region36
        $region35: #{tpu_custom_call.1} parent=27 // pred_region
          %s276 = smul.u32 4, %s28
          %p277 = scmp.lt.s32.totalorder %s27, 1
          %s278 = scalar_select %p277, %s27, 1
          %p279 = scmp.lt.s32.totalorder %s276, 3
          %s280 = scalar_select %p279, %s276, 3
          %s281 = smul.addr %s278, 4
          %s282 = sadd.s32 %s280, %s281
          %s283 = smul.addr %s282, 2
          %s284 = scalar_lea.vmem %s1, %s283
          %s285 = smul.u32 4, %s28
        $region36: #{tpu_custom_call.1} parent=27 // pred_fallthru
          _
        // Predicated region
        $region37: #{tpu_custom_call.1} parent=27 // pred_check
          %p286 = pneg %p108
        $region38: #{tpu_custom_call.1} parent=27 // pred_check_branch
          %288 = sbr.rel (%p286) target = $region40
        $region39: #{tpu_custom_call.1} parent=27 // pred_region
          %s289 = sand.u32 %s98, 1
          %s290 = scalar_lea.sflag [#allocation3], %s289
          %s291 = sand.u32 %s98, 1
          %s292 = smul.addr %s291, 64
          %s293 = scalar_lea.vmem [#allocation2], %s292
          %295 = vsyncadd %s290, 0
          %s296 = smul.addr %s27, 16
          %s297 = smul.addr %s296, 4
          %s298 = scalar_lea.hbm %s2, %s297
          %s299 = sshll.u32 %s298, 4
          %s300 = int_to_ptr.hbm [resolvable:$true] %s299
          %s301 = sshll.u32 %s293, 4
          %s302 = int_to_ptr.vmem [resolvable:$true] %s301
          %307 = dma.hbm_to_vmem [thread:$0]  %s300, 1024, %s302, %s290, 256, 256, 16
        $region40: #{tpu_custom_call.1} parent=27 // pred_fallthru
          _
      $region28: #{tpu_custom_call.1} parent=5 // pred_fallthru
        _
      %p308 = scmp.le.s32.totalorder 1, %s20
      %p309 = scmp.lt.s32.totalorder %s20, 3
      %p310 = pnand %p308, %p309
      %p311 = pneg %p310
      // Predicated region
      $region41: #{tpu_custom_call.1} parent=5 // pred_check
        _
      $region42: #{tpu_custom_call.1} parent=5 // pred_check_branch
        %313 = sbr.rel (%p310) target = $region44
      $region43: #{tpu_custom_call.1} parent=5 // pred_region
        %s314 = ssub.s32 %s20, 1
        %s315 = sand.u32 %s101, 1
        %s316 = scalar_lea.sflag [#allocation3], %s315
        %s317 = sand.u32 %s101, 1
        %s318 = smul.addr %s317, 64
        %s319 = scalar_lea.vmem [#allocation2], %s318
        // Predicated region
        $region45: #{tpu_custom_call.1} parent=43 // pred_check
          %p320 = pneg %p114
        $region46: #{tpu_custom_call.1} parent=43 // pred_check_branch
          %322 = sbr.rel (%p320) target = $region48
        $region47: #{tpu_custom_call.1} parent=43 // pred_region
          %324 = dma.done %s316, 1024
        $region48: #{tpu_custom_call.1} parent=43 // pred_fallthru
          _
        %s325 = smul.u32 4, %s30
        %p326 = scmp.lt.s32.totalorder %s29, 1
        %s327 = scalar_select %p326, %s29, 1
        %p328 = scmp.lt.s32.totalorder %s325, 3
        %s329 = scalar_select %p328, %s325, 3
        %s330 = smul.addr %s327, 4
        %s331 = sadd.s32 %s329, %s330
        %s332 = scalar_lea.vmem %s0, %s331
        %p333 = pneg %p60
        %p334 = pneg %p57
        %s335 = smul.u32 4, %s30
        %p336 = scmp.lt.s32.totalorder %s29, 1
        %s337 = scalar_select %p336, %s29, 1
        %p338 = scmp.lt.s32.totalorder %s335, 3
        %s339 = scalar_select %p338, %s335, 3
        %s340 = smul.addr %s337, 4
        %s341 = sadd.s32 %s339, %s340
        %s342 = smul.addr %s341, 2
        %s343 = scalar_lea.vmem %s1, %s342
        %p344 = pneg %p88
        %p345 = pneg %p85
        %s346 = sand.u32 %s101, 1
        %s347 = scalar_lea.sflag [#allocation3], %s346
        %s348 = sand.u32 %s101, 1
        %s349 = smul.addr %s348, 64
        %s350 = scalar_lea.vmem [#allocation2], %s349
        %p351 = pneg %p114
        %p352 = pneg %p111
        %p353 = pneg %p135
        %p354 = pneg %p132
        %p355 = pneg %p156
        %p356 = pneg %p153
        %p357 = pneg %p177
        %p358 = pneg %p174
        %p359 = pneg %p205
        %p360 = pneg %p202
        %s361 = smul.u32 4, %s30
        %p362 = scmp.lt.s32.totalorder %s29, 1
        %s363 = scalar_select %p362, %s29, 1
        %p364 = scmp.lt.s32.totalorder %s361, 3
        %s365 = scalar_select %p364, %s361, 3
        %s366 = smul.addr %s363, 4
        %s367 = sadd.s32 %s365, %s366
        %s368 = smul.addr %s367, 4
        %s369 = scalar_lea.vmem %s6, %s368
        %p370 = pneg %p233
        %p371 = pneg %p230
        %s372 = sand.u32 %s220, 1
        %s373 = scalar_lea.sflag [#allocation4], %s372
        %s374 = sand.u32 %s220, 1
        %s375 = smul.addr %s374, 4
        %s376 = scalar_lea.vmem [#allocation5], %s375
        %s377 = smul.u32 4, %s30
        %p378 = scmp.lt.s32.totalorder %s29, 1
        %s379 = scalar_select %p378, %s29, 1
        %p380 = scmp.lt.s32.totalorder %s377, 3
        %s381 = scalar_select %p380, %s377, 3
        %s382 = smul.addr %s379, 4
        %s383 = sadd.s32 %s381, %s382
        %s384 = scalar_lea.vmem %s0, %s383
        %s385 = smul.u32 4, %s30
        %s386 = smul.u32 4, %s30
        %p387 = scmp.lt.s32.totalorder %s29, 1
        %s388 = scalar_select %p387, %s29, 1
        %p389 = scmp.lt.s32.totalorder %s386, 3
        %s390 = scalar_select %p389, %s386, 3
        %s391 = smul.addr %s388, 4
        %s392 = sadd.s32 %s390, %s391
        %s393 = smul.addr %s392, 2
        %s394 = scalar_lea.vmem %s1, %s393
        %s395 = smul.u32 4, %s30
        %s396 = smul.u32 4, %s30
        %p397 = scmp.lt.s32.totalorder %s29, 1
        %s398 = scalar_select %p397, %s29, 1
        %p399 = scmp.lt.s32.totalorder %s396, 3
        %s400 = scalar_select %p399, %s396, 3
        %s401 = smul.addr %s398, 4
        %s402 = sadd.s32 %s400, %s401
        %s403 = smul.addr %s402, 4
        %s404 = scalar_lea.vmem %s6, %s403
        %s405 = smul.u32 4, %s30
        %s406 = smul.u32 4, %s30
        %v408 = vld [vmem:[%s384] sm:$0xf]
        %v409 = vlaneseq
        %v410 = vshrl.u32 %v409, 7
        %v411 = vadd.s32 %v410, 8
        %v412 = vadd.s32 %v410, 16
        %v413 = vadd.s32 %v410, 24
        %v414 = vadd.s32 %v410, 32
        %v415 = vadd.s32 %v410, 40
        %v416 = vadd.s32 %v410, 48
        %v417 = vadd.s32 %v410, 56
        %v418 = vadd.s32 %v410, 64
        %v419 = vadd.s32 %v410, 72
        %v420 = vadd.s32 %v410, 80
        %v421 = vadd.s32 %v410, 88
        %v422 = vadd.s32 %v410, 96
        %v423 = vadd.s32 %v410, 104
        %v424 = vadd.s32 %v410, 112
        %v425 = vadd.s32 %v410, 120
        %v426 = vadd.s32 %v410, 128
        %v427 = vadd.s32 %v410, 136
        %v428 = vadd.s32 %v410, 144
        %v429 = vadd.s32 %v410, 152
        %v430 = vadd.s32 %v410, 160
        %v431 = vadd.s32 %v410, 168
        %v432 = vadd.s32 %v410, 176
        %v433 = vadd.s32 %v410, 184
        %v434 = vadd.s32 %v410, 192
        %v435 = vadd.s32 %v410, 200
        %v436 = vadd.s32 %v410, 208
        %v437 = vadd.s32 %v410, 216
        %v438 = vadd.s32 %v410, 224
        %v439 = vadd.s32 %v410, 232
        %v440 = vadd.s32 %v410, 240
        %v441 = vadd.s32 %v410, 248
        %v442 = vadd.s32 %v410, 256
        %v443 = vadd.s32 %v410, 264
        %v444 = vadd.s32 %v410, 272
        %v445 = vadd.s32 %v410, 280
        %v446 = vadd.s32 %v410, 288
        %v447 = vadd.s32 %v410, 296
        %v448 = vadd.s32 %v410, 304
        %v449 = vadd.s32 %v410, 312
        %v450 = vadd.s32 %v410, 320
        %v451 = vadd.s32 %v410, 328
        %v452 = vadd.s32 %v410, 336
        %v453 = vadd.s32 %v410, 344
        %v454 = vadd.s32 %v410, 352
        %v455 = vadd.s32 %v410, 360
        %v456 = vadd.s32 %v410, 368
        %v457 = vadd.s32 %v410, 376
        %v458 = vadd.s32 %v410, 384
        %v459 = vadd.s32 %v410, 392
        %v460 = vadd.s32 %v410, 400
        %v461 = vadd.s32 %v410, 408
        %v462 = vadd.s32 %v410, 416
        %v463 = vadd.s32 %v410, 424
        %v464 = vadd.s32 %v410, 432
        %v465 = vadd.s32 %v410, 440
        %v466 = vadd.s32 %v410, 448
        %v467 = vadd.s32 %v410, 456
        %v468 = vadd.s32 %v410, 464
        %v469 = vadd.s32 %v410, 472
        %v470 = vadd.s32 %v410, 480
        %v471 = vadd.s32 %v410, 488
        %v472 = vadd.s32 %v410, 496
        %v473 = vadd.s32 %v410, 504
        %v474 = vperm.slane %v408, 0
        %v475 = vperm.slane %v408, 1
        %v476 = vperm.slane %v408, 2
        %v477 = vperm.slane %v408, 3
        %vm478 = vcmp.eq.s32.totalorder %v410, %v474
        %vm479 = vcmp.eq.s32.totalorder %v410, %v475
        %vm480 = vcmp.eq.s32.totalorder %v410, %v476
        %vm481 = vcmp.eq.s32.totalorder %v410, %v477
        %vm482 = vcmp.eq.s32.totalorder %v411, %v474
        %vm483 = vcmp.eq.s32.totalorder %v411, %v475
        %vm484 = vcmp.eq.s32.totalorder %v411, %v476
        %vm485 = vcmp.eq.s32.totalorder %v411, %v477
        %vm486 = vcmp.eq.s32.totalorder %v412, %v474
        %vm487 = vcmp.eq.s32.totalorder %v412, %v475
        %vm488 = vcmp.eq.s32.totalorder %v412, %v476
        %vm489 = vcmp.eq.s32.totalorder %v412, %v477
        %vm490 = vcmp.eq.s32.totalorder %v413, %v474
        %vm491 = vcmp.eq.s32.totalorder %v413, %v475
        %vm492 = vcmp.eq.s32.totalorder %v413, %v476
        %vm493 = vcmp.eq.s32.totalorder %v413, %v477
        %vm494 = vcmp.eq.s32.totalorder %v414, %v474
        %vm495 = vcmp.eq.s32.totalorder %v414, %v475
        %vm496 = vcmp.eq.s32.totalorder %v414, %v476
        %vm497 = vcmp.eq.s32.totalorder %v414, %v477
        %vm498 = vcmp.eq.s32.totalorder %v415, %v474
        %vm499 = vcmp.eq.s32.totalorder %v415, %v475
        %vm500 = vcmp.eq.s32.totalorder %v415, %v476
        %vm501 = vcmp.eq.s32.totalorder %v415, %v477
        %vm502 = vcmp.eq.s32.totalorder %v416, %v474
        %vm503 = vcmp.eq.s32.totalorder %v416, %v475
        %vm504 = vcmp.eq.s32.totalorder %v416, %v476
        %vm505 = vcmp.eq.s32.totalorder %v416, %v477
        %vm506 = vcmp.eq.s32.totalorder %v417, %v474
        %vm507 = vcmp.eq.s32.totalorder %v417, %v475
        %vm508 = vcmp.eq.s32.totalorder %v417, %v476
        %vm509 = vcmp.eq.s32.totalorder %v417, %v477
        %vm510 = vcmp.eq.s32.totalorder %v418, %v474
        %vm511 = vcmp.eq.s32.totalorder %v418, %v475
        %vm512 = vcmp.eq.s32.totalorder %v418, %v476
        %vm513 = vcmp.eq.s32.totalorder %v418, %v477
        %vm514 = vcmp.eq.s32.totalorder %v419, %v474
        %vm515 = vcmp.eq.s32.totalorder %v419, %v475
        %vm516 = vcmp.eq.s32.totalorder %v419, %v476
        %vm517 = vcmp.eq.s32.totalorder %v419, %v477
        %vm518 = vcmp.eq.s32.totalorder %v420, %v474
        %vm519 = vcmp.eq.s32.totalorder %v420, %v475
        %vm520 = vcmp.eq.s32.totalorder %v420, %v476
        %vm521 = vcmp.eq.s32.totalorder %v420, %v477
        %vm522 = vcmp.eq.s32.totalorder %v421, %v474
        %vm523 = vcmp.eq.s32.totalorder %v421, %v475
        %vm524 = vcmp.eq.s32.totalorder %v421, %v476
        %vm525 = vcmp.eq.s32.totalorder %v421, %v477
        %vm526 = vcmp.eq.s32.totalorder %v422, %v474
        %vm527 = vcmp.eq.s32.totalorder %v422, %v475
        %vm528 = vcmp.eq.s32.totalorder %v422, %v476
        %vm529 = vcmp.eq.s32.totalorder %v422, %v477
        %vm530 = vcmp.eq.s32.totalorder %v423, %v474
        %vm531 = vcmp.eq.s32.totalorder %v423, %v475
        %vm532 = vcmp.eq.s32.totalorder %v423, %v476
        %vm533 = vcmp.eq.s32.totalorder %v423, %v477
        %vm534 = vcmp.eq.s32.totalorder %v424, %v474
        %vm535 = vcmp.eq.s32.totalorder %v424, %v475
        %vm536 = vcmp.eq.s32.totalorder %v424, %v476
        %vm537 = vcmp.eq.s32.totalorder %v424, %v477
        %vm538 = vcmp.eq.s32.totalorder %v425, %v474
        %vm539 = vcmp.eq.s32.totalorder %v425, %v475
        %vm540 = vcmp.eq.s32.totalorder %v425, %v476
        %vm541 = vcmp.eq.s32.totalorder %v425, %v477
        %vm542 = vcmp.eq.s32.totalorder %v426, %v474
        %vm543 = vcmp.eq.s32.totalorder %v426, %v475
        %vm544 = vcmp.eq.s32.totalorder %v426, %v476
        %vm545 = vcmp.eq.s32.totalorder %v426, %v477
        %vm546 = vcmp.eq.s32.totalorder %v427, %v474
        %vm547 = vcmp.eq.s32.totalorder %v427, %v475
        %vm548 = vcmp.eq.s32.totalorder %v427, %v476
        %vm549 = vcmp.eq.s32.totalorder %v427, %v477
        %vm550 = vcmp.eq.s32.totalorder %v428, %v474
        %vm551 = vcmp.eq.s32.totalorder %v428, %v475
        %vm552 = vcmp.eq.s32.totalorder %v428, %v476
        %vm553 = vcmp.eq.s32.totalorder %v428, %v477
        %vm554 = vcmp.eq.s32.totalorder %v429, %v474
        %vm555 = vcmp.eq.s32.totalorder %v429, %v475
        %vm556 = vcmp.eq.s32.totalorder %v429, %v476
        %vm557 = vcmp.eq.s32.totalorder %v429, %v477
        %vm558 = vcmp.eq.s32.totalorder %v430, %v474
        %vm559 = vcmp.eq.s32.totalorder %v430, %v475
        %vm560 = vcmp.eq.s32.totalorder %v430, %v476
        %vm561 = vcmp.eq.s32.totalorder %v430, %v477
        %vm562 = vcmp.eq.s32.totalorder %v431, %v474
        %vm563 = vcmp.eq.s32.totalorder %v431, %v475
        %vm564 = vcmp.eq.s32.totalorder %v431, %v476
        %vm565 = vcmp.eq.s32.totalorder %v431, %v477
        %vm566 = vcmp.eq.s32.totalorder %v432, %v474
        %vm567 = vcmp.eq.s32.totalorder %v432, %v475
        %vm568 = vcmp.eq.s32.totalorder %v432, %v476
        %vm569 = vcmp.eq.s32.totalorder %v432, %v477
        %vm570 = vcmp.eq.s32.totalorder %v433, %v474
        %vm571 = vcmp.eq.s32.totalorder %v433, %v475
        %vm572 = vcmp.eq.s32.totalorder %v433, %v476
        %vm573 = vcmp.eq.s32.totalorder %v433, %v477
        %vm574 = vcmp.eq.s32.totalorder %v434, %v474
        %vm575 = vcmp.eq.s32.totalorder %v434, %v475
        %vm576 = vcmp.eq.s32.totalorder %v434, %v476
        %vm577 = vcmp.eq.s32.totalorder %v434, %v477
        %vm578 = vcmp.eq.s32.totalorder %v435, %v474
        %vm579 = vcmp.eq.s32.totalorder %v435, %v475
        %vm580 = vcmp.eq.s32.totalorder %v435, %v476
        %vm581 = vcmp.eq.s32.totalorder %v435, %v477
        %vm582 = vcmp.eq.s32.totalorder %v436, %v474
        %vm583 = vcmp.eq.s32.totalorder %v436, %v475
        %vm584 = vcmp.eq.s32.totalorder %v436, %v476
        %vm585 = vcmp.eq.s32.totalorder %v436, %v477
        %vm586 = vcmp.eq.s32.totalorder %v437, %v474
        %vm587 = vcmp.eq.s32.totalorder %v437, %v475
        %vm588 = vcmp.eq.s32.totalorder %v437, %v476
        %vm589 = vcmp.eq.s32.totalorder %v437, %v477
        %vm590 = vcmp.eq.s32.totalorder %v438, %v474
        %vm591 = vcmp.eq.s32.totalorder %v438, %v475
        %vm592 = vcmp.eq.s32.totalorder %v438, %v476
        %vm593 = vcmp.eq.s32.totalorder %v438, %v477
        %vm594 = vcmp.eq.s32.totalorder %v439, %v474
        %vm595 = vcmp.eq.s32.totalorder %v439, %v475
        %vm596 = vcmp.eq.s32.totalorder %v439, %v476
        %vm597 = vcmp.eq.s32.totalorder %v439, %v477
        %vm598 = vcmp.eq.s32.totalorder %v440, %v474
        %vm599 = vcmp.eq.s32.totalorder %v440, %v475
        %vm600 = vcmp.eq.s32.totalorder %v440, %v476
        %vm601 = vcmp.eq.s32.totalorder %v440, %v477
        %vm602 = vcmp.eq.s32.totalorder %v441, %v474
        %vm603 = vcmp.eq.s32.totalorder %v441, %v475
        %vm604 = vcmp.eq.s32.totalorder %v441, %v476
        %vm605 = vcmp.eq.s32.totalorder %v441, %v477
        %vm606 = vcmp.eq.s32.totalorder %v442, %v474
        %vm607 = vcmp.eq.s32.totalorder %v442, %v475
        %vm608 = vcmp.eq.s32.totalorder %v442, %v476
        %vm609 = vcmp.eq.s32.totalorder %v442, %v477
        %vm610 = vcmp.eq.s32.totalorder %v443, %v474
        %vm611 = vcmp.eq.s32.totalorder %v443, %v475
        %vm612 = vcmp.eq.s32.totalorder %v443, %v476
        %vm613 = vcmp.eq.s32.totalorder %v443, %v477
        %vm614 = vcmp.eq.s32.totalorder %v444, %v474
        %vm615 = vcmp.eq.s32.totalorder %v444, %v475
        %vm616 = vcmp.eq.s32.totalorder %v444, %v476
        %vm617 = vcmp.eq.s32.totalorder %v444, %v477
        %vm618 = vcmp.eq.s32.totalorder %v445, %v474
        %vm619 = vcmp.eq.s32.totalorder %v445, %v475
        %vm620 = vcmp.eq.s32.totalorder %v445, %v476
        %vm621 = vcmp.eq.s32.totalorder %v445, %v477
        %vm622 = vcmp.eq.s32.totalorder %v446, %v474
        %vm623 = vcmp.eq.s32.totalorder %v446, %v475
        %vm624 = vcmp.eq.s32.totalorder %v446, %v476
        %vm625 = vcmp.eq.s32.totalorder %v446, %v477
        %vm626 = vcmp.eq.s32.totalorder %v447, %v474
        %vm627 = vcmp.eq.s32.totalorder %v447, %v475
        %vm628 = vcmp.eq.s32.totalorder %v447, %v476
        %vm629 = vcmp.eq.s32.totalorder %v447, %v477
        %vm630 = vcmp.eq.s32.totalorder %v448, %v474
        %vm631 = vcmp.eq.s32.totalorder %v448, %v475
        %vm632 = vcmp.eq.s32.totalorder %v448, %v476
        %vm633 = vcmp.eq.s32.totalorder %v448, %v477
        %vm634 = vcmp.eq.s32.totalorder %v449, %v474
        %vm635 = vcmp.eq.s32.totalorder %v449, %v475
        %vm636 = vcmp.eq.s32.totalorder %v449, %v476
        %vm637 = vcmp.eq.s32.totalorder %v449, %v477
        %vm638 = vcmp.eq.s32.totalorder %v450, %v474
        %vm639 = vcmp.eq.s32.totalorder %v450, %v475
        %vm640 = vcmp.eq.s32.totalorder %v450, %v476
        %vm641 = vcmp.eq.s32.totalorder %v450, %v477
        %vm642 = vcmp.eq.s32.totalorder %v451, %v474
        %vm643 = vcmp.eq.s32.totalorder %v451, %v475
        %vm644 = vcmp.eq.s32.totalorder %v451, %v476
        %vm645 = vcmp.eq.s32.totalorder %v451, %v477
        %vm646 = vcmp.eq.s32.totalorder %v452, %v474
        %vm647 = vcmp.eq.s32.totalorder %v452, %v475
        %vm648 = vcmp.eq.s32.totalorder %v452, %v476
        %vm649 = vcmp.eq.s32.totalorder %v452, %v477
        %vm650 = vcmp.eq.s32.totalorder %v453, %v474
        %vm651 = vcmp.eq.s32.totalorder %v453, %v475
        %vm652 = vcmp.eq.s32.totalorder %v453, %v476
        %vm653 = vcmp.eq.s32.totalorder %v453, %v477
        %vm654 = vcmp.eq.s32.totalorder %v454, %v474
        %vm655 = vcmp.eq.s32.totalorder %v454, %v475
        %vm656 = vcmp.eq.s32.totalorder %v454, %v476
        %vm657 = vcmp.eq.s32.totalorder %v454, %v477
        %vm658 = vcmp.eq.s32.totalorder %v455, %v474
        %vm659 = vcmp.eq.s32.totalorder %v455, %v475
        %vm660 = vcmp.eq.s32.totalorder %v455, %v476
        %vm661 = vcmp.eq.s32.totalorder %v455, %v477
        %vm662 = vcmp.eq.s32.totalorder %v456, %v474
        %vm663 = vcmp.eq.s32.totalorder %v456, %v475
        %vm664 = vcmp.eq.s32.totalorder %v456, %v476
        %vm665 = vcmp.eq.s32.totalorder %v456, %v477
        %vm666 = vcmp.eq.s32.totalorder %v457, %v474
        %vm667 = vcmp.eq.s32.totalorder %v457, %v475
        %vm668 = vcmp.eq.s32.totalorder %v457, %v476
        %vm669 = vcmp.eq.s32.totalorder %v457, %v477
        %vm670 = vcmp.eq.s32.totalorder %v458, %v474
        %vm671 = vcmp.eq.s32.totalorder %v458, %v475
        %vm672 = vcmp.eq.s32.totalorder %v458, %v476
        %vm673 = vcmp.eq.s32.totalorder %v458, %v477
        %vm674 = vcmp.eq.s32.totalorder %v459, %v474
        %vm675 = vcmp.eq.s32.totalorder %v459, %v475
        %vm676 = vcmp.eq.s32.totalorder %v459, %v476
        %vm677 = vcmp.eq.s32.totalorder %v459, %v477
        %vm678 = vcmp.eq.s32.totalorder %v460, %v474
        %vm679 = vcmp.eq.s32.totalorder %v460, %v475
        %vm680 = vcmp.eq.s32.totalorder %v460, %v476
        %vm681 = vcmp.eq.s32.totalorder %v460, %v477
        %vm682 = vcmp.eq.s32.totalorder %v461, %v474
        %vm683 = vcmp.eq.s32.totalorder %v461, %v475
        %vm684 = vcmp.eq.s32.totalorder %v461, %v476
        %vm685 = vcmp.eq.s32.totalorder %v461, %v477
        %vm686 = vcmp.eq.s32.totalorder %v462, %v474
        %vm687 = vcmp.eq.s32.totalorder %v462, %v475
        %vm688 = vcmp.eq.s32.totalorder %v462, %v476
        %vm689 = vcmp.eq.s32.totalorder %v462, %v477
        %vm690 = vcmp.eq.s32.totalorder %v463, %v474
        %vm691 = vcmp.eq.s32.totalorder %v463, %v475
        %vm692 = vcmp.eq.s32.totalorder %v463, %v476
        %vm693 = vcmp.eq.s32.totalorder %v463, %v477
        %vm694 = vcmp.eq.s32.totalorder %v464, %v474
        %vm695 = vcmp.eq.s32.totalorder %v464, %v475
        %vm696 = vcmp.eq.s32.totalorder %v464, %v476
        %vm697 = vcmp.eq.s32.totalorder %v464, %v477
        %vm698 = vcmp.eq.s32.totalorder %v465, %v474
        %vm699 = vcmp.eq.s32.totalorder %v465, %v475
        %vm700 = vcmp.eq.s32.totalorder %v465, %v476
        %vm701 = vcmp.eq.s32.totalorder %v465, %v477
        %vm702 = vcmp.eq.s32.totalorder %v466, %v474
        %vm703 = vcmp.eq.s32.totalorder %v466, %v475
        %vm704 = vcmp.eq.s32.totalorder %v466, %v476
        %vm705 = vcmp.eq.s32.totalorder %v466, %v477
        %vm706 = vcmp.eq.s32.totalorder %v467, %v474
        %vm707 = vcmp.eq.s32.totalorder %v467, %v475
        %vm708 = vcmp.eq.s32.totalorder %v467, %v476
        %vm709 = vcmp.eq.s32.totalorder %v467, %v477
        %vm710 = vcmp.eq.s32.totalorder %v468, %v474
        %vm711 = vcmp.eq.s32.totalorder %v468, %v475
        %vm712 = vcmp.eq.s32.totalorder %v468, %v476
        %vm713 = vcmp.eq.s32.totalorder %v468, %v477
        %vm714 = vcmp.eq.s32.totalorder %v469, %v474
        %vm715 = vcmp.eq.s32.totalorder %v469, %v475
        %vm716 = vcmp.eq.s32.totalorder %v469, %v476
        %vm717 = vcmp.eq.s32.totalorder %v469, %v477
        %vm718 = vcmp.eq.s32.totalorder %v470, %v474
        %vm719 = vcmp.eq.s32.totalorder %v470, %v475
        %vm720 = vcmp.eq.s32.totalorder %v470, %v476
        %vm721 = vcmp.eq.s32.totalorder %v470, %v477
        %vm722 = vcmp.eq.s32.totalorder %v471, %v474
        %vm723 = vcmp.eq.s32.totalorder %v471, %v475
        %vm724 = vcmp.eq.s32.totalorder %v471, %v476
        %vm725 = vcmp.eq.s32.totalorder %v471, %v477
        %vm726 = vcmp.eq.s32.totalorder %v472, %v474
        %vm727 = vcmp.eq.s32.totalorder %v472, %v475
        %vm728 = vcmp.eq.s32.totalorder %v472, %v476
        %vm729 = vcmp.eq.s32.totalorder %v472, %v477
        %vm730 = vcmp.eq.s32.totalorder %v473, %v474
        %vm731 = vcmp.eq.s32.totalorder %v473, %v475
        %vm732 = vcmp.eq.s32.totalorder %v473, %v476
        %vm733 = vcmp.eq.s32.totalorder %v473, %v477
        %v734 = vsel %vm478, 1.0, 0.0
        %v735 = vsel %vm479, 1.0, 0.0
        %v736 = vsel %vm480, 1.0, 0.0
        %v737 = vsel %vm481, 1.0, 0.0
        %v738 = vsel %vm482, 1.0, 0.0
        %v739 = vsel %vm483, 1.0, 0.0
        %v740 = vsel %vm484, 1.0, 0.0
        %v741 = vsel %vm485, 1.0, 0.0
        %v742 = vsel %vm486, 1.0, 0.0
        %v743 = vsel %vm487, 1.0, 0.0
        %v744 = vsel %vm488, 1.0, 0.0
        %v745 = vsel %vm489, 1.0, 0.0
        %v746 = vsel %vm490, 1.0, 0.0
        %v747 = vsel %vm491, 1.0, 0.0
        %v748 = vsel %vm492, 1.0, 0.0
        %v749 = vsel %vm493, 1.0, 0.0
        %v750 = vsel %vm494, 1.0, 0.0
        %v751 = vsel %vm495, 1.0, 0.0
        %v752 = vsel %vm496, 1.0, 0.0
        %v753 = vsel %vm497, 1.0, 0.0
        %v754 = vsel %vm498, 1.0, 0.0
        %v755 = vsel %vm499, 1.0, 0.0
        %v756 = vsel %vm500, 1.0, 0.0
        %v757 = vsel %vm501, 1.0, 0.0
        %v758 = vsel %vm502, 1.0, 0.0
        %v759 = vsel %vm503, 1.0, 0.0
        %v760 = vsel %vm504, 1.0, 0.0
        %v761 = vsel %vm505, 1.0, 0.0
        %v762 = vsel %vm506, 1.0, 0.0
        %v763 = vsel %vm507, 1.0, 0.0
        %v764 = vsel %vm508, 1.0, 0.0
        %v765 = vsel %vm509, 1.0, 0.0
        %v766 = vsel %vm510, 1.0, 0.0
        %v767 = vsel %vm511, 1.0, 0.0
        %v768 = vsel %vm512, 1.0, 0.0
        %v769 = vsel %vm513, 1.0, 0.0
        %v770 = vsel %vm514, 1.0, 0.0
        %v771 = vsel %vm515, 1.0, 0.0
        %v772 = vsel %vm516, 1.0, 0.0
        %v773 = vsel %vm517, 1.0, 0.0
        %v774 = vsel %vm518, 1.0, 0.0
        %v775 = vsel %vm519, 1.0, 0.0
        %v776 = vsel %vm520, 1.0, 0.0
        %v777 = vsel %vm521, 1.0, 0.0
        %v778 = vsel %vm522, 1.0, 0.0
        %v779 = vsel %vm523, 1.0, 0.0
        %v780 = vsel %vm524, 1.0, 0.0
        %v781 = vsel %vm525, 1.0, 0.0
        %v782 = vsel %vm526, 1.0, 0.0
        %v783 = vsel %vm527, 1.0, 0.0
        %v784 = vsel %vm528, 1.0, 0.0
        %v785 = vsel %vm529, 1.0, 0.0
        %v786 = vsel %vm530, 1.0, 0.0
        %v787 = vsel %vm531, 1.0, 0.0
        %v788 = vsel %vm532, 1.0, 0.0
        %v789 = vsel %vm533, 1.0, 0.0
        %v790 = vsel %vm534, 1.0, 0.0
        %v791 = vsel %vm535, 1.0, 0.0
        %v792 = vsel %vm536, 1.0, 0.0
        %v793 = vsel %vm537, 1.0, 0.0
        %v794 = vsel %vm538, 1.0, 0.0
        %v795 = vsel %vm539, 1.0, 0.0
        %v796 = vsel %vm540, 1.0, 0.0
        %v797 = vsel %vm541, 1.0, 0.0
        %v798 = vsel %vm542, 1.0, 0.0
        %v799 = vsel %vm543, 1.0, 0.0
        %v800 = vsel %vm544, 1.0, 0.0
        %v801 = vsel %vm545, 1.0, 0.0
        %v802 = vsel %vm546, 1.0, 0.0
        %v803 = vsel %vm547, 1.0, 0.0
        %v804 = vsel %vm548, 1.0, 0.0
        %v805 = vsel %vm549, 1.0, 0.0
        %v806 = vsel %vm550, 1.0, 0.0
        %v807 = vsel %vm551, 1.0, 0.0
        %v808 = vsel %vm552, 1.0, 0.0
        %v809 = vsel %vm553, 1.0, 0.0
        %v810 = vsel %vm554, 1.0, 0.0
        %v811 = vsel %vm555, 1.0, 0.0
        %v812 = vsel %vm556, 1.0, 0.0
        %v813 = vsel %vm557, 1.0, 0.0
        %v814 = vsel %vm558, 1.0, 0.0
        %v815 = vsel %vm559, 1.0, 0.0
        %v816 = vsel %vm560, 1.0, 0.0
        %v817 = vsel %vm561, 1.0, 0.0
        %v818 = vsel %vm562, 1.0, 0.0
        %v819 = vsel %vm563, 1.0, 0.0
        %v820 = vsel %vm564, 1.0, 0.0
        %v821 = vsel %vm565, 1.0, 0.0
        %v822 = vsel %vm566, 1.0, 0.0
        %v823 = vsel %vm567, 1.0, 0.0
        %v824 = vsel %vm568, 1.0, 0.0
        %v825 = vsel %vm569, 1.0, 0.0
        %v826 = vsel %vm570, 1.0, 0.0
        %v827 = vsel %vm571, 1.0, 0.0
        %v828 = vsel %vm572, 1.0, 0.0
        %v829 = vsel %vm573, 1.0, 0.0
        %v830 = vsel %vm574, 1.0, 0.0
        %v831 = vsel %vm575, 1.0, 0.0
        %v832 = vsel %vm576, 1.0, 0.0
        %v833 = vsel %vm577, 1.0, 0.0
        %v834 = vsel %vm578, 1.0, 0.0
        %v835 = vsel %vm579, 1.0, 0.0
        %v836 = vsel %vm580, 1.0, 0.0
        %v837 = vsel %vm581, 1.0, 0.0
        %v838 = vsel %vm582, 1.0, 0.0
        %v839 = vsel %vm583, 1.0, 0.0
        %v840 = vsel %vm584, 1.0, 0.0
        %v841 = vsel %vm585, 1.0, 0.0
        %v842 = vsel %vm586, 1.0, 0.0
        %v843 = vsel %vm587, 1.0, 0.0
        %v844 = vsel %vm588, 1.0, 0.0
        %v845 = vsel %vm589, 1.0, 0.0
        %v846 = vsel %vm590, 1.0, 0.0
        %v847 = vsel %vm591, 1.0, 0.0
        %v848 = vsel %vm592, 1.0, 0.0
        %v849 = vsel %vm593, 1.0, 0.0
        %v850 = vsel %vm594, 1.0, 0.0
        %v851 = vsel %vm595, 1.0, 0.0
        %v852 = vsel %vm596, 1.0, 0.0
        %v853 = vsel %vm597, 1.0, 0.0
        %v854 = vsel %vm598, 1.0, 0.0
        %v855 = vsel %vm599, 1.0, 0.0
        %v856 = vsel %vm600, 1.0, 0.0
        %v857 = vsel %vm601, 1.0, 0.0
        %v858 = vsel %vm602, 1.0, 0.0
        %v859 = vsel %vm603, 1.0, 0.0
        %v860 = vsel %vm604, 1.0, 0.0
        %v861 = vsel %vm605, 1.0, 0.0
        %v862 = vsel %vm606, 1.0, 0.0
        %v863 = vsel %vm607, 1.0, 0.0
        %v864 = vsel %vm608, 1.0, 0.0
        %v865 = vsel %vm609, 1.0, 0.0
        %v866 = vsel %vm610, 1.0, 0.0
        %v867 = vsel %vm611, 1.0, 0.0
        %v868 = vsel %vm612, 1.0, 0.0
        %v869 = vsel %vm613, 1.0, 0.0
        %v870 = vsel %vm614, 1.0, 0.0
        %v871 = vsel %vm615, 1.0, 0.0
        %v872 = vsel %vm616, 1.0, 0.0
        %v873 = vsel %vm617, 1.0, 0.0
        %v874 = vsel %vm618, 1.0, 0.0
        %v875 = vsel %vm619, 1.0, 0.0
        %v876 = vsel %vm620, 1.0, 0.0
        %v877 = vsel %vm621, 1.0, 0.0
        %v878 = vsel %vm622, 1.0, 0.0
        %v879 = vsel %vm623, 1.0, 0.0
        %v880 = vsel %vm624, 1.0, 0.0
        %v881 = vsel %vm625, 1.0, 0.0
        %v882 = vsel %vm626, 1.0, 0.0
        %v883 = vsel %vm627, 1.0, 0.0
        %v884 = vsel %vm628, 1.0, 0.0
        %v885 = vsel %vm629, 1.0, 0.0
        %v886 = vsel %vm630, 1.0, 0.0
        %v887 = vsel %vm631, 1.0, 0.0
        %v888 = vsel %vm632, 1.0, 0.0
        %v889 = vsel %vm633, 1.0, 0.0
        %v890 = vsel %vm634, 1.0, 0.0
        %v891 = vsel %vm635, 1.0, 0.0
        %v892 = vsel %vm636, 1.0, 0.0
        %v893 = vsel %vm637, 1.0, 0.0
        %v894 = vsel %vm638, 1.0, 0.0
        %v895 = vsel %vm639, 1.0, 0.0
        %v896 = vsel %vm640, 1.0, 0.0
        %v897 = vsel %vm641, 1.0, 0.0
        %v898 = vsel %vm642, 1.0, 0.0
        %v899 = vsel %vm643, 1.0, 0.0
        %v900 = vsel %vm644, 1.0, 0.0
        %v901 = vsel %vm645, 1.0, 0.0
        %v902 = vsel %vm646, 1.0, 0.0
        %v903 = vsel %vm647, 1.0, 0.0
        %v904 = vsel %vm648, 1.0, 0.0
        %v905 = vsel %vm649, 1.0, 0.0
        %v906 = vsel %vm650, 1.0, 0.0
        %v907 = vsel %vm651, 1.0, 0.0
        %v908 = vsel %vm652, 1.0, 0.0
        %v909 = vsel %vm653, 1.0, 0.0
        %v910 = vsel %vm654, 1.0, 0.0
        %v911 = vsel %vm655, 1.0, 0.0
        %v912 = vsel %vm656, 1.0, 0.0
        %v913 = vsel %vm657, 1.0, 0.0
        %v914 = vsel %vm658, 1.0, 0.0
        %v915 = vsel %vm659, 1.0, 0.0
        %v916 = vsel %vm660, 1.0, 0.0
        %v917 = vsel %vm661, 1.0, 0.0
        %v918 = vsel %vm662, 1.0, 0.0
        %v919 = vsel %vm663, 1.0, 0.0
        %v920 = vsel %vm664, 1.0, 0.0
        %v921 = vsel %vm665, 1.0, 0.0
        %v922 = vsel %vm666, 1.0, 0.0
        %v923 = vsel %vm667, 1.0, 0.0
        %v924 = vsel %vm668, 1.0, 0.0
        %v925 = vsel %vm669, 1.0, 0.0
        %v926 = vsel %vm670, 1.0, 0.0
        %v927 = vsel %vm671, 1.0, 0.0
        %v928 = vsel %vm672, 1.0, 0.0
        %v929 = vsel %vm673, 1.0, 0.0
        %v930 = vsel %vm674, 1.0, 0.0
        %v931 = vsel %vm675, 1.0, 0.0
        %v932 = vsel %vm676, 1.0, 0.0
        %v933 = vsel %vm677, 1.0, 0.0
        %v934 = vsel %vm678, 1.0, 0.0
        %v935 = vsel %vm679, 1.0, 0.0
        %v936 = vsel %vm680, 1.0, 0.0
        %v937 = vsel %vm681, 1.0, 0.0
        %v938 = vsel %vm682, 1.0, 0.0
        %v939 = vsel %vm683, 1.0, 0.0
        %v940 = vsel %vm684, 1.0, 0.0
        %v941 = vsel %vm685, 1.0, 0.0
        %v942 = vsel %vm686, 1.0, 0.0
        %v943 = vsel %vm687, 1.0, 0.0
        %v944 = vsel %vm688, 1.0, 0.0
        %v945 = vsel %vm689, 1.0, 0.0
        %v946 = vsel %vm690, 1.0, 0.0
        %v947 = vsel %vm691, 1.0, 0.0
        %v948 = vsel %vm692, 1.0, 0.0
        %v949 = vsel %vm693, 1.0, 0.0
        %v950 = vsel %vm694, 1.0, 0.0
        %v951 = vsel %vm695, 1.0, 0.0
        %v952 = vsel %vm696, 1.0, 0.0
        %v953 = vsel %vm697, 1.0, 0.0
        %v954 = vsel %vm698, 1.0, 0.0
        %v955 = vsel %vm699, 1.0, 0.0
        %v956 = vsel %vm700, 1.0, 0.0
        %v957 = vsel %vm701, 1.0, 0.0
        %v958 = vsel %vm702, 1.0, 0.0
        %v959 = vsel %vm703, 1.0, 0.0
        %v960 = vsel %vm704, 1.0, 0.0
        %v961 = vsel %vm705, 1.0, 0.0
        %v962 = vsel %vm706, 1.0, 0.0
        %v963 = vsel %vm707, 1.0, 0.0
        %v964 = vsel %vm708, 1.0, 0.0
        %v965 = vsel %vm709, 1.0, 0.0
        %v966 = vsel %vm710, 1.0, 0.0
        %v967 = vsel %vm711, 1.0, 0.0
        %v968 = vsel %vm712, 1.0, 0.0
        %v969 = vsel %vm713, 1.0, 0.0
        %v970 = vsel %vm714, 1.0, 0.0
        %v971 = vsel %vm715, 1.0, 0.0
        %v972 = vsel %vm716, 1.0, 0.0
        %v973 = vsel %vm717, 1.0, 0.0
        %v974 = vsel %vm718, 1.0, 0.0
        %v975 = vsel %vm719, 1.0, 0.0
        %v976 = vsel %vm720, 1.0, 0.0
        %v977 = vsel %vm721, 1.0, 0.0
        %v978 = vsel %vm722, 1.0, 0.0
        %v979 = vsel %vm723, 1.0, 0.0
        %v980 = vsel %vm724, 1.0, 0.0
        %v981 = vsel %vm725, 1.0, 0.0
        %v982 = vsel %vm726, 1.0, 0.0
        %v983 = vsel %vm727, 1.0, 0.0
        %v984 = vsel %vm728, 1.0, 0.0
        %v985 = vsel %vm729, 1.0, 0.0
        %v986 = vsel %vm730, 1.0, 0.0
        %v987 = vsel %vm731, 1.0, 0.0
        %v988 = vsel %vm732, 1.0, 0.0
        %v989 = vsel %vm733, 1.0, 0.0
        %v990 = vpack.c.bf16 %v738, %v734
        %v991 = vpack.c.bf16 %v739, %v735
        %v992 = vpack.c.bf16 %v740, %v736
        %v993 = vpack.c.bf16 %v741, %v737
        %v994 = vpack.c.bf16 %v746, %v742
        %v995 = vpack.c.bf16 %v747, %v743
        %v996 = vpack.c.bf16 %v748, %v744
        %v997 = vpack.c.bf16 %v749, %v745
        %v998 = vpack.c.bf16 %v754, %v750
        %v999 = vpack.c.bf16 %v755, %v751
        %v1000 = vpack.c.bf16 %v756, %v752
        %v1001 = vpack.c.bf16 %v757, %v753
        %v1002 = vpack.c.bf16 %v762, %v758
        %v1003 = vpack.c.bf16 %v763, %v759
        %v1004 = vpack.c.bf16 %v764, %v760
        %v1005 = vpack.c.bf16 %v765, %v761
        %v1006 = vpack.c.bf16 %v770, %v766
        %v1007 = vpack.c.bf16 %v771, %v767
        %v1008 = vpack.c.bf16 %v772, %v768
        %v1009 = vpack.c.bf16 %v773, %v769
        %v1010 = vpack.c.bf16 %v778, %v774
        %v1011 = vpack.c.bf16 %v779, %v775
        %v1012 = vpack.c.bf16 %v780, %v776
        %v1013 = vpack.c.bf16 %v781, %v777
        %v1014 = vpack.c.bf16 %v786, %v782
        %v1015 = vpack.c.bf16 %v787, %v783
        %v1016 = vpack.c.bf16 %v788, %v784
        %v1017 = vpack.c.bf16 %v789, %v785
        %v1018 = vpack.c.bf16 %v794, %v790
        %v1019 = vpack.c.bf16 %v795, %v791
        %v1020 = vpack.c.bf16 %v796, %v792
        %v1021 = vpack.c.bf16 %v797, %v793
        %v1022 = vpack.c.bf16 %v802, %v798
        %v1023 = vpack.c.bf16 %v803, %v799
        %v1024 = vpack.c.bf16 %v804, %v800
        %v1025 = vpack.c.bf16 %v805, %v801
        %v1026 = vpack.c.bf16 %v810, %v806
        %v1027 = vpack.c.bf16 %v811, %v807
        %v1028 = vpack.c.bf16 %v812, %v808
        %v1029 = vpack.c.bf16 %v813, %v809
        %v1030 = vpack.c.bf16 %v818, %v814
        %v1031 = vpack.c.bf16 %v819, %v815
        %v1032 = vpack.c.bf16 %v820, %v816
        %v1033 = vpack.c.bf16 %v821, %v817
        %v1034 = vpack.c.bf16 %v826, %v822
        %v1035 = vpack.c.bf16 %v827, %v823
        %v1036 = vpack.c.bf16 %v828, %v824
        %v1037 = vpack.c.bf16 %v829, %v825
        %v1038 = vpack.c.bf16 %v834, %v830
        %v1039 = vpack.c.bf16 %v835, %v831
        %v1040 = vpack.c.bf16 %v836, %v832
        %v1041 = vpack.c.bf16 %v837, %v833
        %v1042 = vpack.c.bf16 %v842, %v838
        %v1043 = vpack.c.bf16 %v843, %v839
        %v1044 = vpack.c.bf16 %v844, %v840
        %v1045 = vpack.c.bf16 %v845, %v841
        %v1046 = vpack.c.bf16 %v850, %v846
        %v1047 = vpack.c.bf16 %v851, %v847
        %v1048 = vpack.c.bf16 %v852, %v848
        %v1049 = vpack.c.bf16 %v853, %v849
        %v1050 = vpack.c.bf16 %v858, %v854
        %v1051 = vpack.c.bf16 %v859, %v855
        %v1052 = vpack.c.bf16 %v860, %v856
        %v1053 = vpack.c.bf16 %v861, %v857
        %v1054 = vpack.c.bf16 %v866, %v862
        %v1055 = vpack.c.bf16 %v867, %v863
        %v1056 = vpack.c.bf16 %v868, %v864
        %v1057 = vpack.c.bf16 %v869, %v865
        %v1058 = vpack.c.bf16 %v874, %v870
        %v1059 = vpack.c.bf16 %v875, %v871
        %v1060 = vpack.c.bf16 %v876, %v872
        %v1061 = vpack.c.bf16 %v877, %v873
        %v1062 = vpack.c.bf16 %v882, %v878
        %v1063 = vpack.c.bf16 %v883, %v879
        %v1064 = vpack.c.bf16 %v884, %v880
        %v1065 = vpack.c.bf16 %v885, %v881
        %v1066 = vpack.c.bf16 %v890, %v886
        %v1067 = vpack.c.bf16 %v891, %v887
        %v1068 = vpack.c.bf16 %v892, %v888
        %v1069 = vpack.c.bf16 %v893, %v889
        %v1070 = vpack.c.bf16 %v898, %v894
        %v1071 = vpack.c.bf16 %v899, %v895
        %v1072 = vpack.c.bf16 %v900, %v896
        %v1073 = vpack.c.bf16 %v901, %v897
        %v1074 = vpack.c.bf16 %v906, %v902
        %v1075 = vpack.c.bf16 %v907, %v903
        %v1076 = vpack.c.bf16 %v908, %v904
        %v1077 = vpack.c.bf16 %v909, %v905
        %v1078 = vpack.c.bf16 %v914, %v910
        %v1079 = vpack.c.bf16 %v915, %v911
        %v1080 = vpack.c.bf16 %v916, %v912
        %v1081 = vpack.c.bf16 %v917, %v913
        %v1082 = vpack.c.bf16 %v922, %v918
        %v1083 = vpack.c.bf16 %v923, %v919
        %v1084 = vpack.c.bf16 %v924, %v920
        %v1085 = vpack.c.bf16 %v925, %v921
        %v1086 = vpack.c.bf16 %v930, %v926
        %v1087 = vpack.c.bf16 %v931, %v927
        %v1088 = vpack.c.bf16 %v932, %v928
        %v1089 = vpack.c.bf16 %v933, %v929
        %v1090 = vpack.c.bf16 %v938, %v934
        %v1091 = vpack.c.bf16 %v939, %v935
        %v1092 = vpack.c.bf16 %v940, %v936
        %v1093 = vpack.c.bf16 %v941, %v937
        %v1094 = vpack.c.bf16 %v946, %v942
        %v1095 = vpack.c.bf16 %v947, %v943
        %v1096 = vpack.c.bf16 %v948, %v944
        %v1097 = vpack.c.bf16 %v949, %v945
        %v1098 = vpack.c.bf16 %v954, %v950
        %v1099 = vpack.c.bf16 %v955, %v951
        %v1100 = vpack.c.bf16 %v956, %v952
        %v1101 = vpack.c.bf16 %v957, %v953
        %v1102 = vpack.c.bf16 %v962, %v958
        %v1103 = vpack.c.bf16 %v963, %v959
        %v1104 = vpack.c.bf16 %v964, %v960
        %v1105 = vpack.c.bf16 %v965, %v961
        %v1106 = vpack.c.bf16 %v970, %v966
        %v1107 = vpack.c.bf16 %v971, %v967
        %v1108 = vpack.c.bf16 %v972, %v968
        %v1109 = vpack.c.bf16 %v973, %v969
        %v1110 = vpack.c.bf16 %v978, %v974
        %v1111 = vpack.c.bf16 %v979, %v975
        %v1112 = vpack.c.bf16 %v980, %v976
        %v1113 = vpack.c.bf16 %v981, %v977
        %v1114 = vpack.c.bf16 %v986, %v982
        %v1115 = vpack.c.bf16 %v987, %v983
        %v1116 = vpack.c.bf16 %v988, %v984
        %v1117 = vpack.c.bf16 %v989, %v985
        %v1118 = vld [vmem:[%s319] sm:$0xff]
        %v1119 = vld [vmem:[%s319 + $0x8] sm:$0xff]
        %v1120 = vld [vmem:[%s319 + $0x10] sm:$0xff]
        %v1121 = vld [vmem:[%s319 + $0x18] sm:$0xff]
        %v1122 = vld [vmem:[%s319 + $0x20] sm:$0xff]
        %v1123 = vld [vmem:[%s319 + $0x28] sm:$0xff]
        %v1124 = vld [vmem:[%s319 + $0x30] sm:$0xff]
        %v1125 = vld [vmem:[%s319 + $0x38] sm:$0xff]
        %v1126 = vld [vmem:[%s394] sm:$0xff]
        %v1127 = vld [vmem:[%s3] sm:$0xff]
        %v1128 = vld [vmem:[%s3 + $0x8] sm:$0xff]
        %v1129 = vld [vmem:[%s3 + $0x10] sm:$0xff]
        %v1130 = vld [vmem:[%s3 + $0x18] sm:$0xff]
        %1132 = vset.pattern.permute.xlu0 0
        %1133 = vperm.xlu0 %1132, %v1127
        %v1134 = vpop.permute.xlu0 %1133
        %1137 = vset.pattern.permute.xlu0 0
        %1138 = vperm.xlu0 %1137, %v1128
        %v1139 = vpop.permute.xlu0 %1138
        %1142 = vset.pattern.permute.xlu0 0
        %1143 = vperm.xlu0 %1142, %v1129
        %v1144 = vpop.permute.xlu0 %1143
        %1147 = vset.pattern.permute.xlu0 0
        %1148 = vperm.xlu0 %1147, %v1130
        %v1149 = vpop.permute.xlu0 %1148
        %v1152 = vperm.slane %v1126, 0
        %v1153 = vperm.slane %v1126, 2
        %v1154 = vperm.slane %v1126, 4
        %v1155 = vperm.slane %v1126, 6
        %v1160 = vperm.slane %v1152, 0
        %v1161 = vperm.slane %v1153, 0
        %v1162 = vperm.slane %v1154, 0
        %v1163 = vperm.slane %v1155, 0
        %v1164 = vmul.f32 %v1134, %v1160
        %v1165 = vmul.f32 %v1134, %v1161
        %v1166 = vmul.f32 %v1134, %v1162
        %v1167 = vmul.f32 %v1134, %v1163
        %v1168 = vmul.f32 %v1139, %v1160
        %v1169 = vmul.f32 %v1139, %v1161
        %v1170 = vmul.f32 %v1139, %v1162
        %v1171 = vmul.f32 %v1139, %v1163
        %v1172 = vmul.f32 %v1144, %v1160
        %v1173 = vmul.f32 %v1144, %v1161
        %v1174 = vmul.f32 %v1144, %v1162
        %v1175 = vmul.f32 %v1144, %v1163
        %v1176 = vmul.f32 %v1149, %v1160
        %v1177 = vmul.f32 %v1149, %v1161
        %v1178 = vmul.f32 %v1149, %v1162
        %v1179 = vmul.f32 %v1149, %v1163
        %v1188 = vunpack.c.l.b16 %v1118
        %v1189 = vunpack.c.h.b16 %v1118
        %v1190 = vunpack.c.l.b16 %v1119
        %v1191 = vunpack.c.h.b16 %v1119
        %v1192 = vunpack.c.l.b16 %v1120
        %v1193 = vunpack.c.h.b16 %v1120
        %v1194 = vunpack.c.l.b16 %v1121
        %v1195 = vunpack.c.h.b16 %v1121
        %v1196 = vunpack.c.l.b16 %v1122
        %v1197 = vunpack.c.h.b16 %v1122
        %v1198 = vunpack.c.l.b16 %v1123
        %v1199 = vunpack.c.h.b16 %v1123
        %v1200 = vunpack.c.l.b16 %v1124
        %v1201 = vunpack.c.h.b16 %v1124
        %v1202 = vunpack.c.l.b16 %v1125
        %v1203 = vunpack.c.h.b16 %v1125
        %v1204 = vpack.c.b16 %v1192, %v1188
        %v1205 = vpack.c.b16 %v1193, %v1189
        %v1206 = vpack.c.b16 %v1194, %v1190
        %v1207 = vpack.c.b16 %v1195, %v1191
        %v1208 = vpack.c.b16 %v1200, %v1196
        %v1209 = vpack.c.b16 %v1201, %v1197
        %v1210 = vpack.c.b16 %v1202, %v1198
        %v1211 = vpack.c.b16 %v1203, %v1199
        %1220 = vmatpush.bf16.msra.mxu0 %v1018
        %1221 = vmatpush.bf16.msra.mxu0 %v1014
        %1222 = vmatpush.bf16.msra.mxu0 %v1010
        %1223 = vmatpush.bf16.msra.mxu0 %v1006
        %1224 = vmatpush.bf16.msra.mxu0 %v1002
        %1225 = vmatpush.bf16.msra.mxu0 %v998
        %1226 = vmatpush.bf16.msra.mxu0 %v994
        %1227 = vmatpush.bf16.msra.mxu0 %v990
        %1228 = vmatmul.bf16.gmra.mxu0 %v1204
        %v1229 = vpop.f32.mrf.mxu0
        %v1230 = vadd.f32 %v1164, %v1229
        %v1231 = vpop.f32.mrf.mxu0
        %v1232 = vadd.f32 %v1168, %v1231
        %1233 = vmatmul.bf16.gmra.mxu0 %v1208
        %v1234 = vpop.f32.mrf.mxu0
        %v1235 = vadd.f32 %v1172, %v1234
        %v1236 = vpop.f32.mrf.mxu0
        %v1237 = vadd.f32 %v1176, %v1236
        %1238 = vdwg.mxu0
        %1239 = vmatpush.bf16.msra.mxu0 %v1050
        %1240 = vmatpush.bf16.msra.mxu0 %v1046
        %1241 = vmatpush.bf16.msra.mxu0 %v1042
        %1242 = vmatpush.bf16.msra.mxu0 %v1038
        %1243 = vmatpush.bf16.msra.mxu0 %v1034
        %1244 = vmatpush.bf16.msra.mxu0 %v1030
        %1245 = vmatpush.bf16.msra.mxu0 %v1026
        %1246 = vmatpush.bf16.msra.mxu0 %v1022
        %1247 = vmatmul.bf16.gmra.mxu0 %v1205
        %v1248 = vpop.f32.mrf.mxu0
        %v1249 = vadd.f32 %v1230, %v1248
        %v1250 = vpop.f32.mrf.mxu0
        %v1251 = vadd.f32 %v1232, %v1250
        %1252 = vmatmul.bf16.gmra.mxu0 %v1209
        %v1253 = vpop.f32.mrf.mxu0
        %v1254 = vadd.f32 %v1235, %v1253
        %v1255 = vpop.f32.mrf.mxu0
        %v1256 = vadd.f32 %v1237, %v1255
        %1257 = vdwg.mxu0
        %1258 = vmatpush.bf16.msra.mxu0 %v1082
        %1259 = vmatpush.bf16.msra.mxu0 %v1078
        %1260 = vmatpush.bf16.msra.mxu0 %v1074
        %1261 = vmatpush.bf16.msra.mxu0 %v1070
        %1262 = vmatpush.bf16.msra.mxu0 %v1066
        %1263 = vmatpush.bf16.msra.mxu0 %v1062
        %1264 = vmatpush.bf16.msra.mxu0 %v1058
        %1265 = vmatpush.bf16.msra.mxu0 %v1054
        %1266 = vmatmul.bf16.gmra.mxu0 %v1206
        %v1267 = vpop.f32.mrf.mxu0
        %v1268 = vadd.f32 %v1249, %v1267
        %v1269 = vpop.f32.mrf.mxu0
        %v1270 = vadd.f32 %v1251, %v1269
        %1271 = vmatmul.bf16.gmra.mxu0 %v1210
        %v1272 = vpop.f32.mrf.mxu0
        %v1273 = vadd.f32 %v1254, %v1272
        %v1274 = vpop.f32.mrf.mxu0
        %v1275 = vadd.f32 %v1256, %v1274
        %1276 = vdwg.mxu0
        %1277 = vmatpush.bf16.msra.mxu0 %v1114
        %1278 = vmatpush.bf16.msra.mxu0 %v1110
        %1279 = vmatpush.bf16.msra.mxu0 %v1106
        %1280 = vmatpush.bf16.msra.mxu0 %v1102
        %1281 = vmatpush.bf16.msra.mxu0 %v1098
        %1282 = vmatpush.bf16.msra.mxu0 %v1094
        %1283 = vmatpush.bf16.msra.mxu0 %v1090
        %1284 = vmatpush.bf16.msra.mxu0 %v1086
        %1285 = vmatmul.bf16.gmra.mxu0 %v1207
        %v1286 = vpop.f32.mrf.mxu0
        %v1287 = vadd.f32 %v1268, %v1286
        %v1288 = vpop.f32.mrf.mxu0
        %v1289 = vadd.f32 %v1270, %v1288
        %1290 = vmatmul.bf16.gmra.mxu0 %v1211
        %v1291 = vpop.f32.mrf.mxu0
        %v1292 = vadd.f32 %v1273, %v1291
        %v1293 = vpop.f32.mrf.mxu0
        %v1294 = vadd.f32 %v1275, %v1293
        %1295 = vdwg.mxu0
        %1296 = vmatpush.bf16.msra.mxu0 %v1019
        %1297 = vmatpush.bf16.msra.mxu0 %v1015
        %1298 = vmatpush.bf16.msra.mxu0 %v1011
        %1299 = vmatpush.bf16.msra.mxu0 %v1007
        %1300 = vmatpush.bf16.msra.mxu0 %v1003
        %1301 = vmatpush.bf16.msra.mxu0 %v999
        %1302 = vmatpush.bf16.msra.mxu0 %v995
        %1303 = vmatpush.bf16.msra.mxu0 %v991
        %1304 = vmatmul.bf16.gmra.mxu0 %v1204
        %v1305 = vpop.f32.mrf.mxu0
        %v1306 = vadd.f32 %v1165, %v1305
        %v1307 = vpop.f32.mrf.mxu0
        %v1308 = vadd.f32 %v1169, %v1307
        %1309 = vmatmul.bf16.gmra.mxu0 %v1208
        %v1310 = vpop.f32.mrf.mxu0
        %v1311 = vadd.f32 %v1173, %v1310
        %v1312 = vpop.f32.mrf.mxu0
        %v1313 = vadd.f32 %v1177, %v1312
        %1314 = vdwg.mxu0
        %1315 = vmatpush.bf16.msra.mxu0 %v1051
        %1316 = vmatpush.bf16.msra.mxu0 %v1047
        %1317 = vmatpush.bf16.msra.mxu0 %v1043
        %1318 = vmatpush.bf16.msra.mxu0 %v1039
        %1319 = vmatpush.bf16.msra.mxu0 %v1035
        %1320 = vmatpush.bf16.msra.mxu0 %v1031
        %1321 = vmatpush.bf16.msra.mxu0 %v1027
        %1322 = vmatpush.bf16.msra.mxu0 %v1023
        %1323 = vmatmul.bf16.gmra.mxu0 %v1205
        %v1324 = vpop.f32.mrf.mxu0
        %v1325 = vadd.f32 %v1306, %v1324
        %v1326 = vpop.f32.mrf.mxu0
        %v1327 = vadd.f32 %v1308, %v1326
        %1328 = vmatmul.bf16.gmra.mxu0 %v1209
        %v1329 = vpop.f32.mrf.mxu0
        %v1330 = vadd.f32 %v1311, %v1329
        %v1331 = vpop.f32.mrf.mxu0
        %v1332 = vadd.f32 %v1313, %v1331
        %1333 = vdwg.mxu0
        %1334 = vmatpush.bf16.msra.mxu0 %v1083
        %1335 = vmatpush.bf16.msra.mxu0 %v1079
        %1336 = vmatpush.bf16.msra.mxu0 %v1075
        %1337 = vmatpush.bf16.msra.mxu0 %v1071
        %1338 = vmatpush.bf16.msra.mxu0 %v1067
        %1339 = vmatpush.bf16.msra.mxu0 %v1063
        %1340 = vmatpush.bf16.msra.mxu0 %v1059
        %1341 = vmatpush.bf16.msra.mxu0 %v1055
        %1342 = vmatmul.bf16.gmra.mxu0 %v1206
        %v1343 = vpop.f32.mrf.mxu0
        %v1344 = vadd.f32 %v1325, %v1343
        %v1345 = vpop.f32.mrf.mxu0
        %v1346 = vadd.f32 %v1327, %v1345
        %1347 = vmatmul.bf16.gmra.mxu0 %v1210
        %v1348 = vpop.f32.mrf.mxu0
        %v1349 = vadd.f32 %v1330, %v1348
        %v1350 = vpop.f32.mrf.mxu0
        %v1351 = vadd.f32 %v1332, %v1350
        %1352 = vdwg.mxu0
        %1353 = vmatpush.bf16.msra.mxu0 %v1115
        %1354 = vmatpush.bf16.msra.mxu0 %v1111
        %1355 = vmatpush.bf16.msra.mxu0 %v1107
        %1356 = vmatpush.bf16.msra.mxu0 %v1103
        %1357 = vmatpush.bf16.msra.mxu0 %v1099
        %1358 = vmatpush.bf16.msra.mxu0 %v1095
        %1359 = vmatpush.bf16.msra.mxu0 %v1091
        %1360 = vmatpush.bf16.msra.mxu0 %v1087
        %1361 = vmatmul.bf16.gmra.mxu0 %v1207
        %v1362 = vpop.f32.mrf.mxu0
        %v1363 = vadd.f32 %v1344, %v1362
        %v1364 = vpop.f32.mrf.mxu0
        %v1365 = vadd.f32 %v1346, %v1364
        %1366 = vmatmul.bf16.gmra.mxu0 %v1211
        %v1367 = vpop.f32.mrf.mxu0
        %v1368 = vadd.f32 %v1349, %v1367
        %v1369 = vpop.f32.mrf.mxu0
        %v1370 = vadd.f32 %v1351, %v1369
        %1371 = vdwg.mxu0
        %1372 = vmatpush.bf16.msra.mxu0 %v1020
        %1373 = vmatpush.bf16.msra.mxu0 %v1016
        %1374 = vmatpush.bf16.msra.mxu0 %v1012
        %1375 = vmatpush.bf16.msra.mxu0 %v1008
        %1376 = vmatpush.bf16.msra.mxu0 %v1004
        %1377 = vmatpush.bf16.msra.mxu0 %v1000
        %1378 = vmatpush.bf16.msra.mxu0 %v996
        %1379 = vmatpush.bf16.msra.mxu0 %v992
        %1380 = vmatmul.bf16.gmra.mxu0 %v1204
        %v1381 = vpop.f32.mrf.mxu0
        %v1382 = vadd.f32 %v1166, %v1381
        %v1383 = vpop.f32.mrf.mxu0
        %v1384 = vadd.f32 %v1170, %v1383
        %1385 = vmatmul.bf16.gmra.mxu0 %v1208
        %v1386 = vpop.f32.mrf.mxu0
        %v1387 = vadd.f32 %v1174, %v1386
        %v1388 = vpop.f32.mrf.mxu0
        %v1389 = vadd.f32 %v1178, %v1388
        %1390 = vdwg.mxu0
        %1391 = vmatpush.bf16.msra.mxu0 %v1052
        %1392 = vmatpush.bf16.msra.mxu0 %v1048
        %1393 = vmatpush.bf16.msra.mxu0 %v1044
        %1394 = vmatpush.bf16.msra.mxu0 %v1040
        %1395 = vmatpush.bf16.msra.mxu0 %v1036
        %1396 = vmatpush.bf16.msra.mxu0 %v1032
        %1397 = vmatpush.bf16.msra.mxu0 %v1028
        %1398 = vmatpush.bf16.msra.mxu0 %v1024
        %1399 = vmatmul.bf16.gmra.mxu0 %v1205
        %v1400 = vpop.f32.mrf.mxu0
        %v1401 = vadd.f32 %v1382, %v1400
        %v1402 = vpop.f32.mrf.mxu0
        %v1403 = vadd.f32 %v1384, %v1402
        %1404 = vmatmul.bf16.gmra.mxu0 %v1209
        %v1405 = vpop.f32.mrf.mxu0
        %v1406 = vadd.f32 %v1387, %v1405
        %v1407 = vpop.f32.mrf.mxu0
        %v1408 = vadd.f32 %v1389, %v1407
        %1409 = vdwg.mxu0
        %1410 = vmatpush.bf16.msra.mxu0 %v1084
        %1411 = vmatpush.bf16.msra.mxu0 %v1080
        %1412 = vmatpush.bf16.msra.mxu0 %v1076
        %1413 = vmatpush.bf16.msra.mxu0 %v1072
        %1414 = vmatpush.bf16.msra.mxu0 %v1068
        %1415 = vmatpush.bf16.msra.mxu0 %v1064
        %1416 = vmatpush.bf16.msra.mxu0 %v1060
        %1417 = vmatpush.bf16.msra.mxu0 %v1056
        %1418 = vmatmul.bf16.gmra.mxu0 %v1206
        %v1419 = vpop.f32.mrf.mxu0
        %v1420 = vadd.f32 %v1401, %v1419
        %v1421 = vpop.f32.mrf.mxu0
        %v1422 = vadd.f32 %v1403, %v1421
        %1423 = vmatmul.bf16.gmra.mxu0 %v1210
        %v1424 = vpop.f32.mrf.mxu0
        %v1425 = vadd.f32 %v1406, %v1424
        %v1426 = vpop.f32.mrf.mxu0
        %v1427 = vadd.f32 %v1408, %v1426
        %1428 = vdwg.mxu0
        %1429 = vmatpush.bf16.msra.mxu0 %v1116
        %1430 = vmatpush.bf16.msra.mxu0 %v1112
        %1431 = vmatpush.bf16.msra.mxu0 %v1108
        %1432 = vmatpush.bf16.msra.mxu0 %v1104
        %1433 = vmatpush.bf16.msra.mxu0 %v1100
        %1434 = vmatpush.bf16.msra.mxu0 %v1096
        %1435 = vmatpush.bf16.msra.mxu0 %v1092
        %1436 = vmatpush.bf16.msra.mxu0 %v1088
        %1437 = vmatmul.bf16.gmra.mxu0 %v1207
        %v1438 = vpop.f32.mrf.mxu0
        %v1439 = vadd.f32 %v1420, %v1438
        %v1440 = vpop.f32.mrf.mxu0
        %v1441 = vadd.f32 %v1422, %v1440
        %1442 = vmatmul.bf16.gmra.mxu0 %v1211
        %v1443 = vpop.f32.mrf.mxu0
        %v1444 = vadd.f32 %v1425, %v1443
        %v1445 = vpop.f32.mrf.mxu0
        %v1446 = vadd.f32 %v1427, %v1445
        %1447 = vdwg.mxu0
        %1448 = vmatpush.bf16.msra.mxu0 %v1021
        %1449 = vmatpush.bf16.msra.mxu0 %v1017
        %1450 = vmatpush.bf16.msra.mxu0 %v1013
        %1451 = vmatpush.bf16.msra.mxu0 %v1009
        %1452 = vmatpush.bf16.msra.mxu0 %v1005
        %1453 = vmatpush.bf16.msra.mxu0 %v1001
        %1454 = vmatpush.bf16.msra.mxu0 %v997
        %1455 = vmatpush.bf16.msra.mxu0 %v993
        %1456 = vmatmul.bf16.gmra.mxu0 %v1204
        %v1457 = vpop.f32.mrf.mxu0
        %v1458 = vadd.f32 %v1167, %v1457
        %v1459 = vpop.f32.mrf.mxu0
        %v1460 = vadd.f32 %v1171, %v1459
        %1461 = vmatmul.bf16.gmra.mxu0 %v1208
        %v1462 = vpop.f32.mrf.mxu0
        %v1463 = vadd.f32 %v1175, %v1462
        %v1464 = vpop.f32.mrf.mxu0
        %v1465 = vadd.f32 %v1179, %v1464
        %1466 = vdwg.mxu0
        %1467 = vmatpush.bf16.msra.mxu0 %v1053
        %1468 = vmatpush.bf16.msra.mxu0 %v1049
        %1469 = vmatpush.bf16.msra.mxu0 %v1045
        %1470 = vmatpush.bf16.msra.mxu0 %v1041
        %1471 = vmatpush.bf16.msra.mxu0 %v1037
        %1472 = vmatpush.bf16.msra.mxu0 %v1033
        %1473 = vmatpush.bf16.msra.mxu0 %v1029
        %1474 = vmatpush.bf16.msra.mxu0 %v1025
        %1475 = vmatmul.bf16.gmra.mxu0 %v1205
        %v1476 = vpop.f32.mrf.mxu0
        %v1477 = vadd.f32 %v1458, %v1476
        %v1478 = vpop.f32.mrf.mxu0
        %v1479 = vadd.f32 %v1460, %v1478
        %1480 = vmatmul.bf16.gmra.mxu0 %v1209
        %v1481 = vpop.f32.mrf.mxu0
        %v1482 = vadd.f32 %v1463, %v1481
        %v1483 = vpop.f32.mrf.mxu0
        %v1484 = vadd.f32 %v1465, %v1483
        %1485 = vdwg.mxu0
        %1486 = vmatpush.bf16.msra.mxu0 %v1085
        %1487 = vmatpush.bf16.msra.mxu0 %v1081
        %1488 = vmatpush.bf16.msra.mxu0 %v1077
        %1489 = vmatpush.bf16.msra.mxu0 %v1073
        %1490 = vmatpush.bf16.msra.mxu0 %v1069
        %1491 = vmatpush.bf16.msra.mxu0 %v1065
        %1492 = vmatpush.bf16.msra.mxu0 %v1061
        %1493 = vmatpush.bf16.msra.mxu0 %v1057
        %1494 = vmatmul.bf16.gmra.mxu0 %v1206
        %v1495 = vpop.f32.mrf.mxu0
        %v1496 = vadd.f32 %v1477, %v1495
        %v1497 = vpop.f32.mrf.mxu0
        %v1498 = vadd.f32 %v1479, %v1497
        %1499 = vmatmul.bf16.gmra.mxu0 %v1210
        %v1500 = vpop.f32.mrf.mxu0
        %v1501 = vadd.f32 %v1482, %v1500
        %v1502 = vpop.f32.mrf.mxu0
        %v1503 = vadd.f32 %v1484, %v1502
        %1504 = vdwg.mxu0
        %1505 = vmatpush.bf16.msra.mxu0 %v1117
        %1506 = vmatpush.bf16.msra.mxu0 %v1113
        %1507 = vmatpush.bf16.msra.mxu0 %v1109
        %1508 = vmatpush.bf16.msra.mxu0 %v1105
        %1509 = vmatpush.bf16.msra.mxu0 %v1101
        %1510 = vmatpush.bf16.msra.mxu0 %v1097
        %1511 = vmatpush.bf16.msra.mxu0 %v1093
        %1512 = vmatpush.bf16.msra.mxu0 %v1089
        %1513 = vmatmul.bf16.gmra.mxu0 %v1207
        %v1514 = vpop.f32.mrf.mxu0
        %v1515 = vadd.f32 %v1496, %v1514
        %v1516 = vpop.f32.mrf.mxu0
        %v1517 = vadd.f32 %v1498, %v1516
        %1518 = vmatmul.bf16.gmra.mxu0 %v1211
        %v1519 = vpop.f32.mrf.mxu0
        %v1520 = vadd.f32 %v1501, %v1519
        %v1521 = vpop.f32.mrf.mxu0
        %v1522 = vadd.f32 %v1503, %v1521
        %1523 = vdwg.mxu0
        %s1524 = scalar_lea.vmem %s3, 32
        %v1525 = vld [vmem:[%s1524] sm:$0xff]
        %v1526 = vld [vmem:[%s1524 + $0x8] sm:$0xff]
        %v1527 = vld [vmem:[%s1524 + $0x10] sm:$0xff]
        %v1528 = vld [vmem:[%s1524 + $0x18] sm:$0xff]
        %1530 = vset.pattern.permute.xlu0 0
        %1531 = vperm.xlu0 %1530, %v1525
        %v1532 = vpop.permute.xlu0 %1531
        %1535 = vset.pattern.permute.xlu0 0
        %1536 = vperm.xlu0 %1535, %v1526
        %v1537 = vpop.permute.xlu0 %1536
        %1540 = vset.pattern.permute.xlu0 0
        %1541 = vperm.xlu0 %1540, %v1527
        %v1542 = vpop.permute.xlu0 %1541
        %1545 = vset.pattern.permute.xlu0 0
        %1546 = vperm.xlu0 %1545, %v1528
        %v1547 = vpop.permute.xlu0 %1546
        %v1549 = vperm.slane %v1126, 1
        %v1550 = vperm.slane %v1126, 3
        %v1551 = vperm.slane %v1126, 5
        %v1552 = vperm.slane %v1126, 7
        %v1557 = vperm.slane %v1549, 1
        %v1558 = vperm.slane %v1550, 1
        %v1559 = vperm.slane %v1551, 1
        %v1560 = vperm.slane %v1552, 1
        %v1561 = vmul.f32 %v1532, %v1557
        %v1562 = vmul.f32 %v1532, %v1558
        %v1563 = vmul.f32 %v1532, %v1559
        %v1564 = vmul.f32 %v1532, %v1560
        %v1565 = vmul.f32 %v1537, %v1557
        %v1566 = vmul.f32 %v1537, %v1558
        %v1567 = vmul.f32 %v1537, %v1559
        %v1568 = vmul.f32 %v1537, %v1560
        %v1569 = vmul.f32 %v1542, %v1557
        %v1570 = vmul.f32 %v1542, %v1558
        %v1571 = vmul.f32 %v1542, %v1559
        %v1572 = vmul.f32 %v1542, %v1560
        %v1573 = vmul.f32 %v1547, %v1557
        %v1574 = vmul.f32 %v1547, %v1558
        %v1575 = vmul.f32 %v1547, %v1559
        %v1576 = vmul.f32 %v1547, %v1560
        %v1577 = vadd.f32 %v1287, %v1561
        %v1578 = vadd.f32 %v1363, %v1562
        %v1579 = vadd.f32 %v1439, %v1563
        %v1580 = vadd.f32 %v1515, %v1564
        %v1581 = vadd.f32 %v1289, %v1565
        %v1582 = vadd.f32 %v1365, %v1566
        %v1583 = vadd.f32 %v1441, %v1567
        %v1584 = vadd.f32 %v1517, %v1568
        %v1585 = vadd.f32 %v1292, %v1569
        %v1586 = vadd.f32 %v1368, %v1570
        %v1587 = vadd.f32 %v1444, %v1571
        %v1588 = vadd.f32 %v1520, %v1572
        %v1589 = vadd.f32 %v1294, %v1573
        %v1590 = vadd.f32 %v1370, %v1574
        %v1591 = vadd.f32 %v1446, %v1575
        %v1592 = vadd.f32 %v1522, %v1576
        %v1593 = vmax.f32 %v1577, 0.0
        %v1594 = vmax.f32 %v1578, 0.0
        %v1595 = vmax.f32 %v1579, 0.0
        %v1596 = vmax.f32 %v1580, 0.0
        %v1597 = vmax.f32 %v1581, 0.0
        %v1598 = vmax.f32 %v1582, 0.0
        %v1599 = vmax.f32 %v1583, 0.0
        %v1600 = vmax.f32 %v1584, 0.0
        %v1601 = vmax.f32 %v1585, 0.0
        %v1602 = vmax.f32 %v1586, 0.0
        %v1603 = vmax.f32 %v1587, 0.0
        %v1604 = vmax.f32 %v1588, 0.0
        %v1605 = vmax.f32 %v1589, 0.0
        %v1606 = vmax.f32 %v1590, 0.0
        %v1607 = vmax.f32 %v1591, 0.0
        %v1608 = vmax.f32 %v1592, 0.0
        %v1609 = vpack.c.bf16 %v1597, %v1593
        %v1610 = vpack.c.bf16 %v1598, %v1594
        %v1611 = vpack.c.bf16 %v1599, %v1595
        %v1612 = vpack.c.bf16 %v1600, %v1596
        %v1613 = vpack.c.bf16 %v1605, %v1601
        %v1614 = vpack.c.bf16 %v1606, %v1602
        %v1615 = vpack.c.bf16 %v1607, %v1603
        %v1616 = vpack.c.bf16 %v1608, %v1604
        %v1617 = vld [vmem:[%s4] sm:$0x3]
        %v1618 = vld [vmem:[%s5] sm:$0x7]
        %1620 = vset.pattern.permute.xlu0 0
        %1621 = vperm.xlu0 %1620, %v1618
        %v1622 = vpop.permute.xlu0 %1621
        %vm1624 = vcmask 261120
        %v1626 = vsel %vm1624, %v1617, 0
        %1628 = vmatpush.bf16.msra.mxu0 0
        %1629 = vmatpush.bf16.msra.mxu0 0
        %1630 = vmatpush.bf16.msra.mxu0 0
        %1631 = vmatpush.bf16.msra.mxu0 0
        %1632 = vmatpush.bf16.msra.mxu0 0
        %1633 = vmatpush.bf16.msra.mxu0 0
        %1634 = vmatpush.bf16.msra.mxu0 %v1613
        %1635 = vmatpush.bf16.msra.mxu0 %v1609
        %1636 = vmatmul.bf16.gmra.mxu0 %v1626
        %v1637 = vpop.f32.mrf.mxu0
        %v1638 = vadd.f32 %v1622, %v1637
        %v1639 = vpop.f32.mrf.mxu0
        %1640 = vdwg.mxu0
        %1641 = vmatpush.bf16.msra.mxu0 0
        %1642 = vmatpush.bf16.msra.mxu0 0
        %1643 = vmatpush.bf16.msra.mxu0 0
        %1644 = vmatpush.bf16.msra.mxu0 0
        %1645 = vmatpush.bf16.msra.mxu0 0
        %1646 = vmatpush.bf16.msra.mxu0 0
        %1647 = vmatpush.bf16.msra.mxu0 %v1614
        %1648 = vmatpush.bf16.msra.mxu0 %v1610
        %1649 = vmatmul.bf16.gmra.mxu0 %v1626
        %v1650 = vpop.f32.mrf.mxu0
        %v1651 = vadd.f32 %v1622, %v1650
        %v1652 = vpop.f32.mrf.mxu0
        %1653 = vdwg.mxu0
        %1654 = vmatpush.bf16.msra.mxu0 0
        %1655 = vmatpush.bf16.msra.mxu0 0
        %1656 = vmatpush.bf16.msra.mxu0 0
        %1657 = vmatpush.bf16.msra.mxu0 0
        %1658 = vmatpush.bf16.msra.mxu0 0
        %1659 = vmatpush.bf16.msra.mxu0 0
        %1660 = vmatpush.bf16.msra.mxu0 %v1615
        %1661 = vmatpush.bf16.msra.mxu0 %v1611
        %1662 = vmatmul.bf16.gmra.mxu0 %v1626
        %v1663 = vpop.f32.mrf.mxu0
        %v1664 = vadd.f32 %v1622, %v1663
        %v1665 = vpop.f32.mrf.mxu0
        %1666 = vdwg.mxu0
        %1667 = vmatpush.bf16.msra.mxu0 0
        %1668 = vmatpush.bf16.msra.mxu0 0
        %1669 = vmatpush.bf16.msra.mxu0 0
        %1670 = vmatpush.bf16.msra.mxu0 0
        %1671 = vmatpush.bf16.msra.mxu0 0
        %1672 = vmatpush.bf16.msra.mxu0 0
        %1673 = vmatpush.bf16.msra.mxu0 %v1616
        %1674 = vmatpush.bf16.msra.mxu0 %v1612
        %1675 = vmatmul.bf16.gmra.mxu0 %v1626
        %v1676 = vpop.f32.mrf.mxu0
        %v1677 = vadd.f32 %v1622, %v1676
        %v1678 = vpop.f32.mrf.mxu0
        %1679 = vdwg.mxu0
        %v1680 = vmul.f32 %v1638, %v1638
        %v1681 = vmul.f32 %v1651, %v1651
        %v1682 = vmul.f32 %v1664, %v1664
        %v1683 = vmul.f32 %v1677, %v1677
        %v1688 = vrot.slane %v1680, 1
        %v1689 = vrot.slane %v1681, 1
        %v1690 = vrot.slane %v1682, 1
        %v1691 = vrot.slane %v1683, 1
        %v1696 = vadd.f32 %v1680, %v1688
        %v1697 = vadd.f32 %v1681, %v1689
        %v1698 = vadd.f32 %v1682, %v1690
        %v1699 = vadd.f32 %v1683, %v1691
        %v1700 = vrot.slane %v1680, 2
        %v1701 = vrot.slane %v1681, 2
        %v1702 = vrot.slane %v1682, 2
        %v1703 = vrot.slane %v1683, 2
        %v1708 = vadd.f32 %v1696, %v1700
        %v1709 = vadd.f32 %v1697, %v1701
        %v1710 = vadd.f32 %v1698, %v1702
        %v1711 = vadd.f32 %v1699, %v1703
        %v1712 = vrsqrt.pop %v1708
        %v1713 = vmul.f32 %v1712, %v1708
        %v1714 = vmul.f32 %v1713, %v1712
        %v1715 = vmul.f32 0.5, %v1714
        %v1716 = vsub.f32 1.5, %v1715
        %v1717 = vmul.f32 %v1712, %v1716
        %v1718 = vmul.f32 %v1708, %v1717
        %vm1719 = vcmp.eq.f32.partialorder %v1708, inf
        %v1720 = vsel %vm1719, %v1708, %v1718
        %vm1721 = vcmp.eq.f32.partialorder %v1708, 0.0
        %v1722 = vand.u32 %v1708, 2147483648
        %v1723 = vsel %vm1721, %v1722, %v1720
        %v1724 = vrsqrt.pop %v1709
        %v1725 = vmul.f32 %v1724, %v1709
        %v1726 = vmul.f32 %v1725, %v1724
        %v1727 = vmul.f32 0.5, %v1726
        %v1728 = vsub.f32 1.5, %v1727
        %v1729 = vmul.f32 %v1724, %v1728
        %v1730 = vmul.f32 %v1709, %v1729
        %vm1731 = vcmp.eq.f32.partialorder %v1709, inf
        %v1732 = vsel %vm1731, %v1709, %v1730
        %vm1733 = vcmp.eq.f32.partialorder %v1709, 0.0
        %v1734 = vand.u32 %v1709, 2147483648
        %v1735 = vsel %vm1733, %v1734, %v1732
        %v1736 = vrsqrt.pop %v1710
        %v1737 = vmul.f32 %v1736, %v1710
        %v1738 = vmul.f32 %v1737, %v1736
        %v1739 = vmul.f32 0.5, %v1738
        %v1740 = vsub.f32 1.5, %v1739
        %v1741 = vmul.f32 %v1736, %v1740
        %v1742 = vmul.f32 %v1710, %v1741
        %vm1743 = vcmp.eq.f32.partialorder %v1710, inf
        %v1744 = vsel %vm1743, %v1710, %v1742
        %vm1745 = vcmp.eq.f32.partialorder %v1710, 0.0
        %v1746 = vand.u32 %v1710, 2147483648
        %v1747 = vsel %vm1745, %v1746, %v1744
        %v1748 = vrsqrt.pop %v1711
        %v1749 = vmul.f32 %v1748, %v1711
        %v1750 = vmul.f32 %v1749, %v1748
        %v1751 = vmul.f32 0.5, %v1750
        %v1752 = vsub.f32 1.5, %v1751
        %v1753 = vmul.f32 %v1748, %v1752
        %v1754 = vmul.f32 %v1711, %v1753
        %vm1755 = vcmp.eq.f32.partialorder %v1711, inf
        %v1756 = vsel %vm1755, %v1711, %v1754
        %vm1757 = vcmp.eq.f32.partialorder %v1711, 0.0
        %v1758 = vand.u32 %v1711, 2147483648
        %v1759 = vsel %vm1757, %v1758, %v1756
        %v1760 = vsub.f32 %v1723, 0.21650635
        %v1761 = vsub.f32 %v1735, 0.21650635
        %v1762 = vsub.f32 %v1747, 0.21650635
        %v1763 = vsub.f32 %v1759, 0.21650635
        %v1764 = vmax.f32 %v1760, 0.0
        %v1765 = vmax.f32 %v1761, 0.0
        %v1766 = vmax.f32 %v1762, 0.0
        %v1767 = vmax.f32 %v1763, 0.0
        %v1772 = vrot.slane %v1765, 7
        %v1773 = vrot.slane %v1766, 6
        %v1774 = vrot.slane %v1767, 5
        %vm1775 = vcmask 1040384
        %v1776 = vsel %vm1775, %v1764, %v1772
        %vm1777 = vcmask 1042434
        %v1778 = vsel %vm1777, %v1773, %v1774
        %vm1779 = vcmask 1041408
        %v1780 = vsel %vm1779, %v1776, %v1778
        %v1782 = vlaneseq
        %vm1783 = vcmp.ge.s32.totalorder %v1782, 0
        %vm1784 = vcmp.lt.s32.totalorder %v1782, 512
        %vm1785 = vmand %vm1783, %vm1784
        %1786 = vst.msk [vmem:[%s376] sm:$0xf] %vm1785, %v1780
        %v1787 = vcvt.s32.f32 %v408
        %v1788 = vrcp.pop 64.0
        %v1789 = vmul.f32 64.0, %v1788
        %v1790 = vsub.f32 1.0, %v1789
        %v1791 = vmul.f32 %v1788, %v1790
        %v1792 = vadd.f32 %v1788, %v1791
        %vm1793 = vweird.f32 %v1788
        %v1794 = vsel %vm1793, %v1788, %v1792
        %v1795 = vmul.f32 %v1787, %v1794
        %v1796 = vfloor.f32 %v1795
        %v1797 = vmul.f32 %v1796, 64.0
        %v1798 = vsub.f32 %v1787, %v1797
        %v1799 = vrcp.pop 8.0
        %v1800 = vmul.f32 8.0, %v1799
        %v1801 = vsub.f32 1.0, %v1800
        %v1802 = vmul.f32 %v1799, %v1801
        %v1803 = vadd.f32 %v1799, %v1802
        %vm1804 = vweird.f32 %v1799
        %v1805 = vsel %vm1804, %v1799, %v1803
        %v1806 = vmul.f32 %v1798, %v1805
        %v1807 = vfloor.f32 %v1806
        %v1808 = vmul.f32 %v1807, 8.0
        %v1809 = vsub.f32 %v1798, %v1808
        %v1811 = vperm.slane %v1796, 0
        %v1812 = vperm.slane %v1796, 1
        %v1813 = vperm.slane %v1796, 2
        %v1814 = vperm.slane %v1796, 3
        %v1820 = vperm.slane %v1807, 0
        %v1821 = vperm.slane %v1807, 1
        %v1822 = vperm.slane %v1807, 2
        %v1823 = vperm.slane %v1807, 3
        %v1829 = vperm.slane %v1809, 0
        %v1830 = vperm.slane %v1809, 1
        %v1831 = vperm.slane %v1809, 2
        %v1832 = vperm.slane %v1809, 3
        %v1837 = vsel %vm1775, %v1811, %v1820
        %v1838 = vsel %vm1775, %v1812, %v1821
        %v1839 = vsel %vm1775, %v1813, %v1822
        %v1840 = vsel %vm1775, %v1814, %v1823
        %v1841 = vsel %vm1779, %v1837, %v1829
        %v1842 = vsel %vm1779, %v1838, %v1830
        %v1843 = vsel %vm1779, %v1839, %v1831
        %v1844 = vsel %vm1779, %v1840, %v1832
        %v1845 = vadd.f32 %v1841, 0.5
        %v1846 = vadd.f32 %v1842, 0.5
        %v1847 = vadd.f32 %v1843, 0.5
        %v1848 = vadd.f32 %v1844, 0.5
        %v1849 = vmul.f32 %v1845, %v1805
        %v1850 = vmul.f32 %v1846, %v1805
        %v1851 = vmul.f32 %v1847, %v1805
        %v1852 = vmul.f32 %v1848, %v1805
        %v1853 = vsub.f32 %v1849, 0.5
        %v1854 = vsub.f32 %v1850, 0.5
        %v1855 = vsub.f32 %v1851, 0.5
        %v1856 = vsub.f32 %v1852, 0.5
        %v1857 = vadd.f32 %v1638, %v1853
        %v1858 = vadd.f32 %v1651, %v1854
        %v1859 = vadd.f32 %v1664, %v1855
        %v1860 = vadd.f32 %v1677, %v1856
        %v1865 = vrot.slane %v1858, 4
        %v1866 = vrot.slane %v1860, 4
        %vm1867 = vcmask 1043456
        %v1868 = vsel %vm1867, %v1857, %v1865
        %v1869 = vsel %vm1867, %v1859, %v1866
        %1872 = vst [vmem:[%s404] sm:$0x77] %v1868
        %1873 = vst [vmem:[%s404 + $0x8] sm:$0x77] %v1869
        %s1874 = smul.u32 4, %s30
        %p1875 = scmp.lt.s32.totalorder %s29, 1
        %s1876 = scalar_select %p1875, %s29, 1
        %p1877 = scmp.lt.s32.totalorder %s1874, 3
        %s1878 = scalar_select %p1877, %s1874, 3
        %s1879 = smul.addr %s1876, 4
        %s1880 = sadd.s32 %s1878, %s1879
        %s1881 = smul.addr %s1880, 4
        %s1882 = scalar_lea.vmem %s6, %s1881
        %s1883 = sand.u32 %s220, 1
        %s1884 = scalar_lea.sflag [#allocation4], %s1883
        %s1885 = sand.u32 %s220, 1
        %s1886 = smul.addr %s1885, 4
        %s1887 = scalar_lea.vmem [#allocation5], %s1886
        // Predicated region
        $region49: #{tpu_custom_call.1} parent=43 // pred_check
          %p1888 = pneg %p202
        $region50: #{tpu_custom_call.1} parent=43 // pred_check_branch
          %1890 = sbr.rel (%p1888) target = $region52
        $region51: #{tpu_custom_call.1} parent=43 // pred_region
          %s1891 = smul.u32 4, %s30
        $region52: #{tpu_custom_call.1} parent=43 // pred_fallthru
          _
        // Predicated region
        $region53: #{tpu_custom_call.1} parent=43 // pred_check
          %p1892 = pneg %p230
        $region54: #{tpu_custom_call.1} parent=43 // pred_check_branch
          %1894 = sbr.rel (%p1892) target = $region56
        $region55: #{tpu_custom_call.1} parent=43 // pred_region
          %s1895 = smul.u32 4, %s30
          %1897 = vsyncadd %s1884, 0
          %s1898 = smul.addr %s29, 4
          %s1899 = sadd.s32 %s1895, %s1898
          %s1900 = scalar_lea.hbm %s7, %s1899
          %s1902 = sshll.u32 %s1887, 4
          %s1903 = int_to_ptr.vmem [resolvable:$true] %s1902
          %s1904 = sshll.u32 %s1900, 4
          %s1905 = int_to_ptr.hbm [resolvable:$true] %s1904
          %1907 = dma.vmem_to_hbm [thread:$0]  %s1903, 64, %s1905, %s1884
        $region56: #{tpu_custom_call.1} parent=43 // pred_fallthru
          _
      $region44: #{tpu_custom_call.1} parent=5 // pred_fallthru
        _
      %p1908 = scmp.le.s32.totalorder 2, %s20
      // Predicated region
      $region57: #{tpu_custom_call.1} parent=5 // pred_check
        %p1909 = pneg %p1908
      $region58: #{tpu_custom_call.1} parent=5 // pred_check_branch
        %1911 = sbr.rel (%p1909) target = $region60
      $region59: #{tpu_custom_call.1} parent=5 // pred_region
        %s1912 = ssub.s32 %s20, 2
        // Predicated region
        $region61: #{tpu_custom_call.1} parent=59 // pred_check
          %p1913 = pneg %p208
        $region62: #{tpu_custom_call.1} parent=59 // pred_check_branch
          %1915 = sbr.rel (%p1913) target = $region64
        $region63: #{tpu_custom_call.1} parent=59 // pred_region
          %s1916 = smul.u32 4, %s32
          %p1917 = scmp.lt.s32.totalorder %s31, 1
          %s1918 = scalar_select %p1917, %s31, 1
          %p1919 = scmp.lt.s32.totalorder %s1916, 3
          %s1920 = scalar_select %p1919, %s1916, 3
          %s1921 = smul.addr %s1918, 4
          %s1922 = sadd.s32 %s1920, %s1921
          %s1923 = smul.addr %s1922, 4
          %s1924 = scalar_lea.vmem %s6, %s1923
        $region64: #{tpu_custom_call.1} parent=59 // pred_fallthru
          _
        // Predicated region
        $region65: #{tpu_custom_call.1} parent=59 // pred_check
          %p1925 = pneg %p236
        $region66: #{tpu_custom_call.1} parent=59 // pred_check_branch
          %1927 = sbr.rel (%p1925) target = $region68
        $region67: #{tpu_custom_call.1} parent=59 // pred_region
          %s1928 = sand.u32 %s221, 1
          %s1929 = scalar_lea.sflag [#allocation4], %s1928
          %s1930 = sand.u32 %s221, 1
          %s1931 = smul.addr %s1930, 4
          %s1932 = scalar_lea.vmem [#allocation5], %s1931
          %1934 = dma.done %s1929, 64
        $region68: #{tpu_custom_call.1} parent=59 // pred_fallthru
          _
      $region60: #{tpu_custom_call.1} parent=5 // pred_fallthru
        _
    $region6: #{tpu_custom_call.1} parent=1 // loop_footer
      %s24 = sadd.s32 1, %s20
    $region7: #{tpu_custom_call.1} parent=1 // loop_footer_branch
      %19 = sbr.rel target = $region3
    $region8: #{tpu_custom_call.1} parent=1 // loop_exit
      _
    %1935 = vsyncpa [#allocation3], 1
    %s1936 = scalar_lea.sflag [#allocation3], 1
    %1937 = vsyncpa %s1936, 1
    %1938 = vsyncpa [#allocation4], 1
    %s1939 = scalar_lea.sflag [#allocation4], 1
    %1940 = vsyncpa %s1939, 1

</llo_original>
